<compile_context>
chip_gen: v7x
topology: tpu7x:2x2x1
jax: 0.10.0
libtpu: 0.0.40
codegen_flags: <defaults>
</compile_context>

<pallas_src>
import functools
import numpy as np

import jax
import jax.numpy as jnp
from jax import lax
from jax.experimental import pallas as pl
from jax.experimental.pallas import tpu as pltpu

SHIFT, REDUCE = 0, 1
LANE = 128


def _round_up(x, m):
    return ((x + m - 1) // m) * m


# ----------------------------------------------------------------------------
# The whole TreeLSTM forward in one kernel.
# Node table layout: per batch b, rows b*NN .. b*NN+T-1 are leaves (in x order),
# rows b*NN+T .. b*NN+2T-2 are internal nodes in creation order, row b*NN+NN-1
# is a dummy slot used as the index for batch rows that do not reduce at a step
# (those rows are gathered but their results are never stored).
# ----------------------------------------------------------------------------
def _tree_lstm_kernel(left_ref, right_ref, dest_ref, roots_ref,        # SMEM
                      x_ref, wcg_ref, bcg_ref, wrl_ref, wrr_ref, br_ref,  # VMEM
                      out_ref,                                          # VMEM out
                      nodes_h, nodes_c,                                 # VMEM scratch
                      *, B, NN, Hp, S):
    TBL = B * NN

    # ---- Fused leaf projection straight into the resident node table.
    # x_ref rows are already in node-table order (zeros on non-leaf rows).
    proj0 = (jnp.dot(x_ref[...], wcg_ref[...],
                     preferred_element_type=jnp.float32) + bcg_ref[...])
    c0 = proj0[:, :Hp]                       # 128-lane aligned gate slabs
    g0 = jax.nn.sigmoid(proj0[:, Hp:])
    nodes_c[...] = c0
    nodes_h[...] = g0 * jnp.tanh(c0)

    # ---- Loop-invariant values hoisted once (weights, biases, iotas).
    wl = wrl_ref[...]
    wr = wrr_ref[...]
    br = br_ref[...]
    row_ids = lax.broadcasted_iota(jnp.int32, (B, TBL), 0)
    col_ids = lax.broadcasted_iota(jnp.int32, (B, TBL), 1)

    def one_hot(tab_ref, s):
        idx = jnp.zeros((B, TBL), jnp.int32)
        for b in range(B):                               # B scalar SMEM reads
            idx = jnp.where(row_ids == b, tab_ref[s * B + b], idx)
        return (col_ids == idx).astype(jnp.float32)      # [B, B*NN] one-hot

    def step(s, carry):
        # One-hot MXU gather of left/right children (h and c).
        oh_l = one_hot(left_ref, s)
        oh_r = one_hot(right_ref, s)
        h_tab = nodes_h[...]
        c_tab = nodes_c[...]
        h_l = jnp.dot(oh_l, h_tab, preferred_element_type=jnp.float32)
        c_l = jnp.dot(oh_l, c_tab, preferred_element_type=jnp.float32)
        h_r = jnp.dot(oh_r, h_tab, preferred_element_type=jnp.float32)
        c_r = jnp.dot(oh_r, c_tab, preferred_element_type=jnp.float32)

        # N-ary TreeLSTM reduce.  Split dots kept while 2H < 256 (review #10).
        proj = (jnp.dot(h_l, wl, preferred_element_type=jnp.float32)
                + jnp.dot(h_r, wr, preferred_element_type=jnp.float32) + br)
        i_g = jax.nn.sigmoid(proj[:, 0 * Hp:1 * Hp])
        f_l = jax.nn.sigmoid(proj[:, 1 * Hp:2 * Hp])
        f_r = jax.nn.sigmoid(proj[:, 2 * Hp:3 * Hp])
        g_g = jnp.tanh(proj[:, 3 * Hp:4 * Hp])
        o_g = jax.nn.sigmoid(proj[:, 4 * Hp:5 * Hp])
        c_new = i_g * g_g + f_l * c_l + f_r * c_r
        h_new = o_g * jnp.tanh(c_new)

        # Scatter: one dynamic single-row store per active batch row.  Inactive
        # rows (dest == dummy slot) are skipped -> no dummy-slot blow-up.
        for b in range(B):
            d = dest_ref[s * B + b]

            @pl.when(d != b * NN + NN - 1)
            def _():
                nodes_h[pl.ds(d, 1), :] = h_new[b:b + 1, :]
                nodes_c[pl.ds(d, 1), :] = c_new[b:b + 1, :]

        return carry

    lax.fori_loop(0, S, step, 0)

    # ---- Only the root rows leave VMEM.
    for b in range(B):
        out_ref[b:b + 1, :] = nodes_h[pl.ds(roots_ref[b], 1), :]


# ----------------------------------------------------------------------------
# Host-side schedule builder: simulate the stacks on concrete transitions and
# emit per-reduce-step index tables + root node indices (flat 1-D for SMEM).
# ----------------------------------------------------------------------------
def build_reduce_schedule(transitions, B, T, NN):
    buf = [list(range(T)) for _ in range(B)]     # pop() from the end, as in ref
    stacks = [[] for _ in range(B)]
    nxt = [T] * B
    left_rows, right_rows, dest_rows = [], [], []
    for t_batch in transitions:
        dummy = [b * NN + (NN - 1) for b in range(B)]
        l_row, r_row, d_row = list(dummy), list(dummy), list(dummy)
        any_reduce = False
        for b, tr in enumerate(t_batch):
            if tr == SHIFT:
                stacks[b].append(buf[b].pop())
            elif tr == REDUCE:
                assert len(stacks[b]) >= 2, "Stack too small!"
                r = stacks[b].pop()
                l = stacks[b].pop()
                d = nxt[b]
                nxt[b] += 1
                stacks[b].append(d)
                l_row[b] = b * NN + l
                r_row[b] = b * NN + r
                d_row[b] = b * NN + d
                any_reduce = True
        if any_reduce:
            left_rows.append(l_row)
            right_rows.append(r_row)
            dest_rows.append(d_row)
    if not left_rows:            # degenerate: one all-dummy step (stores skipped)
        dummy = [b * NN + (NN - 1) for b in range(B)]
        left_rows, right_rows, dest_rows = [dummy], [dummy], [dummy]
    roots = np.array([b * NN + stacks[b][-1] for b in range(B)], np.int32)
    S = len(left_rows)
    flat = lambda rows: np.asarray(rows, np.int32).reshape(-1)
    return flat(left_rows), flat(right_rows), flat(dest_rows), roots, S


# ----------------------------------------------------------------------------
# Lane-padding helpers (zero pad lanes -> padded lanes stay exactly zero).
# ----------------------------------------------------------------------------
def _pad_gate_weights(w, b, n_gates, H, Hp):
    """w: [in, n_gates*H], b: [1, n_gates*H] -> gate slabs at Hp boundaries."""
    w_p = jnp.zeros((w.shape[0], n_gates * Hp), jnp.float32)
    b_p = jnp.zeros((1, n_gates * Hp), jnp.float32)
    for k in range(n_gates):
        w_p = w_p.at[:, k * Hp:k * Hp + H].set(w[:, k * H:(k + 1) * H])
        b_p = b_p.at[:, k * Hp:k * Hp + H].set(b[:, k * H:(k + 1) * H])
    return w_p, b_p


def _pad_reduce_half(w_half, H, Hp):
    """w_half: [H, 5H] -> [Hp, 5*Hp], gate slabs at Hp boundaries."""
    w_p = jnp.zeros((Hp, 5 * Hp), jnp.float32)
    for k in range(5):
        w_p = w_p.at[:H, k * Hp:k * Hp + H].set(w_half[:, k * H:(k + 1) * H])
    return w_p


# ----------------------------------------------------------------------------
# TreeLSTM forward (Pallas path)
# ----------------------------------------------------------------------------
def tree_lstm_forward(params, x, transitions):
    """x: [B, T, E] (assumed reversed).  transitions: concrete [2T-1, B]."""
    B, T, E = x.shape
    H = params["wc"].shape[1]
    Hp = _round_up(H, LANE)
    NN = 2 * T                   # T leaves + (T-1) internal + 1 dummy per batch

    left, right, dest, roots, S = build_reduce_schedule(
        np.asarray(transitions), B, T, NN)

    # x in node-table row layout (zero rows for internal / dummy slots).
    x_nodes = (jnp.zeros((B, NN, E), jnp.float32)
               .at[:, :T, :].set(x.astype(jnp.float32))
               .reshape(B * NN, E))

    # Fused & lane-padded weights.
    w_cg = jnp.concatenate([params["wc"], params["wg"]], axis=1)   # [E, 2H]
    b_cg = jnp.concatenate([params["bc"], params["bg"]], axis=1)   # [1, 2H]
    w_cg_p, b_cg_p = _pad_gate_weights(w_cg, b_cg, 2, H, Hp)
    wr_l_p = _pad_reduce_half(params["wr"][:H, :], H, Hp)          # h_l weights
    wr_r_p = _pad_reduce_half(params["wr"][H:, :], H, Hp)          # h_r weights
    _, br_p = _pad_gate_weights(jnp.zeros((1, 5 * H), jnp.float32),
                                params["br"], 5, H, Hp)

    resident_bytes = 4 * (x_nodes.size + w_cg_p.size + b_cg_p.size
                          + wr_l_p.size + wr_r_p.size + br_p.size
                          + 2 * B * NN * Hp + B * Hp)
    vmem_limit = int(min(64 * 2**20, max(16 * 2**20, 2 * resident_bytes)))

    kernel = functools.partial(_tree_lstm_kernel, B=B, NN=NN, Hp=Hp, S=S)
    smem = pl.BlockSpec(memory_space=pltpu.MemorySpace.SMEM)
    vmem = pl.BlockSpec(memory_space=pltpu.MemorySpace.VMEM)
    out = pl.pallas_call(
        kernel,
        out_shape=jax.ShapeDtypeStruct((B, Hp), jnp.float32),
        in_specs=[smem, smem, smem, smem,          # left / right / dest / roots
                  vmem, vmem, vmem, vmem, vmem, vmem],
        out_specs=vmem,
        scratch_shapes=[pltpu.VMEM((B * NN, Hp), jnp.float32),     # nodes_h
                        pltpu.VMEM((B * NN, Hp), jnp.float32)],    # nodes_c
        compiler_params=pltpu.CompilerParams(vmem_limit_bytes=vmem_limit),
    )(jnp.asarray(left, jnp.int32), jnp.asarray(right, jnp.int32),
      jnp.asarray(dest, jnp.int32), jnp.asarray(roots, jnp.int32),
      x_nodes, w_cg_p, b_cg_p, wr_l_p, wr_r_p, br_p)
    return out[:, :H]                            # root hidden states [B, H]


# ----------------------------------------------------------------------------
# Pure-JAX reference (host-loop stack machine) for correctness check
# ----------------------------------------------------------------------------
_HP = jax.lax.Precision.HIGHEST


def _nary_reduce_ref(hx_l, hx_r, wr, br):
    H = hx_l.shape[-1] // 2
    h_l, c_l = hx_l[:, :H], hx_l[:, H:]
    h_r, c_r = hx_r[:, :H], hx_r[:, H:]
    proj = jnp.dot(jnp.concatenate([h_l, h_r], -1), wr, precision=_HP) + br
    i, f_l, f_r, g, o = jnp.split(proj, 5, axis=-1)
    c = (jax.nn.sigmoid(i) * jnp.tanh(g)
         + jax.nn.sigmoid(f_l) * c_l + jax.nn.sigmoid(f_r) * c_r)
    h = jax.nn.sigmoid(o) * jnp.tanh(c)
    return jnp.concatenate([h, c], axis=-1)


def tree_lstm_forward_ref(params, x, transitions):
    B, T, E = x.shape
    H = params["wc"].shape[1]
    x2d = x.reshape(B * T, E)
    c = jnp.dot(x2d, params["wc"], precision=_HP) + params["bc"]
    g = jax.nn.sigmoid(jnp.dot(x2d, params["wg"], precision=_HP) + params["bg"])
    buffers_all = jnp.concatenate([g * jnp.tanh(c), c], -1).reshape(B, T, 2 * H)

    buffers = [[buffers_all[b, t][None, :] for t in range(T)] for b in range(B)]
    stacks = [[] for _ in range(B)]
    for t_batch in np.asarray(transitions):
        child_l, child_r = [], []
        for b, tr in enumerate(t_batch):
            if tr == SHIFT:
                stacks[b].append(buffers[b].pop())
            elif tr == REDUCE:
                assert len(stacks[b]) >= 2
                child_r.append(stacks[b].pop())
                child_l.append(stacks[b].pop())
        if child_l:
            reduced = _nary_reduce_ref(jnp.concatenate(child_l, 0),
                                       jnp.concatenate(child_r, 0),
                                       params["wr"], params["br"])
            k = 0
            for b, tr in enumerate(t_batch):
                if tr == REDUCE:
                    stacks[b].append(reduced[k][None, :])
                    k += 1
    return jnp.concatenate([stacks[b].pop()[:, :H] for b in range(B)], axis=0)


# ----------------------------------------------------------------------------
# Deterministic parameter init (weights stored [in, out]; biases [1, out]).
# ----------------------------------------------------------------------------
def init_params(key, input_size, hidden_size):
    E, H = input_size, hidden_size
    ks = jax.random.split(key, 6)

    def lin(kw, kb, fan_in, fan_out):
        bound = 1.0 / np.sqrt(fan_in)
        w = jax.random.uniform(kw, (fan_in, fan_out), jnp.float32, -bound, bound)
        b = jax.random.uniform(kb, (1, fan_out), jnp.float32, -bound, bound)
        return w, b

    wc, bc = lin(ks[0], ks[1], E, H)          # proj_x
    wg, bg = lin(ks[2], ks[3], E, H)          # proj_x_gate
    wr, br = lin(ks[4], ks[5], 2 * H, 5 * H)  # NAryTreeLSTMCell reduce layer
    return dict(wc=wc, bc=bc, wg=wg, bg=bg, wr=wr, br=br)


# ----------------------------------------------------------------------------
if __name__ == "__main__":
    key = jax.random.PRNGKey(0)
    B, T, E, H = 2, 8, 16, 32

    k_x, k_p = jax.random.split(key)
    x = jax.random.normal(k_x, (B, T, E), jnp.float32)
    params = init_params(k_p, E, H)

    # Valid shift-reduce transition sequences, shape [2T-1, B].
    seq_interleaved = ([SHIFT, SHIFT] + [REDUCE, SHIFT] * (T - 1))[:2 * T - 1]
    seq_right_branch = [SHIFT] * T + [REDUCE] * (T - 1)
    transitions = np.stack([np.array(seq_interleaved, np.int32),
                            np.array(seq_right_branch, np.int32)], axis=1)

    out = tree_lstm_forward(params, x, transitions)
    out = jax.block_until_ready(out)
    assert out.shape == (B, H), out.shape

    ref = tree_lstm_forward_ref(params, x, transitions)
    ref = jax.block_until_ready(ref)

    max_err = float(jnp.max(jnp.abs(out - ref)))
    assert max_err < 1e-3, f"max abs error {max_err}"

    print("KERNEL_OK")
</pallas_src>

<mosaic_0001>
module attributes {stable_mosaic.version = 11 : i64} {
  func.func @_tree_lstm_kernel(%arg0: memref<20xi32, #tpu.memory_space<smem>>, %arg1: memref<20xi32, #tpu.memory_space<smem>>, %arg2: memref<20xi32, #tpu.memory_space<smem>>, %arg3: memref<2xi32, #tpu.memory_space<smem>>, %arg4: memref<32x16xf32, #tpu.memory_space<vmem>>, %arg5: memref<16x256xf32, #tpu.memory_space<vmem>>, %arg6: memref<1x256xf32, #tpu.memory_space<vmem>>, %arg7: memref<128x640xf32, #tpu.memory_space<vmem>>, %arg8: memref<128x640xf32, #tpu.memory_space<vmem>>, %arg9: memref<1x640xf32, #tpu.memory_space<vmem>>, %arg10: memref<2x128xf32, #tpu.memory_space<vmem>>, %arg11: memref<32x128xf32, #tpu.memory_space<vmem>>, %arg12: memref<32x128xf32, #tpu.memory_space<vmem>>) attributes {dimension_semantics = [], scalar_prefetch = 0 : i64, scratch_operands = 2 : i64, tpu.core_type = #tpu.core_type<tc>} {
    %c0 = arith.constant 0 : index
    %c0_0 = arith.constant 0 : index
    %0 = vector.load %arg4[%c0, %c0_0] : memref<32x16xf32, #tpu.memory_space<vmem>>, vector<32x16xf32>
    %c0_1 = arith.constant 0 : index
    %c0_2 = arith.constant 0 : index
    %1 = vector.load %arg5[%c0_1, %c0_2] : memref<16x256xf32, #tpu.memory_space<vmem>>, vector<16x256xf32>
    %cst = arith.constant dense<0.000000e+00> : vector<32x256xf32>
    %2 = tpu.matmul %0, %1, %cst {dimension_numbers = #tpu.dot_dimension_numbers<[1], [0], [0], [1], [0, 0, 1, 1], [], []>} : vector<32x16xf32>, vector<16x256xf32>, vector<32x256xf32> -> vector<32x256xf32>
    %c0_3 = arith.constant 0 : index
    %c0_4 = arith.constant 0 : index
    %3 = vector.load %arg6[%c0_3, %c0_4] : memref<1x256xf32, #tpu.memory_space<vmem>>, vector<1x256xf32>
    %4 = vector.broadcast %3 : vector<1x256xf32> to vector<32x256xf32>
    %5 = arith.addf %2, %4 : vector<32x256xf32>
    %6 = vector.extract_strided_slice %5 {offsets = [0, 0], sizes = [32, 128], strides = [1, 1]} : vector<32x256xf32> to vector<32x128xf32>
    %7 = vector.extract_strided_slice %5 {offsets = [0, 128], sizes = [32, 128], strides = [1, 1]} : vector<32x256xf32> to vector<32x128xf32>
    %8 = arith.negf %7 : vector<32x128xf32>
    %9 = math.exp %8 : vector<32x128xf32>
    %cst_5 = arith.constant 1.000000e+00 : f32
    %10 = vector.broadcast %cst_5 : f32 to vector<32x128xf32>
    %11 = arith.addf %10, %9 : vector<32x128xf32>
    %12 = arith.divf %10, %11 : vector<32x128xf32>
    %c0_6 = arith.constant 0 : index
    %c0_7 = arith.constant 0 : index
    %13 = vector.load %arg12[%c0_6, %c0_7] : memref<32x128xf32, #tpu.memory_space<vmem>>, vector<32x128xf32>
    tpu.vector_store %arg12[%c0_6, %c0_7], %6 {strides = array<i32>} : memref<32x128xf32, #tpu.memory_space<vmem>>, vector<32x128xf32>,
    %14 = math.tanh %6 : vector<32x128xf32>
    %15 = arith.mulf %12, %14 : vector<32x128xf32>
    %c0_8 = arith.constant 0 : index
    %c0_9 = arith.constant 0 : index
    %16 = vector.load %arg11[%c0_8, %c0_9] : memref<32x128xf32, #tpu.memory_space<vmem>>, vector<32x128xf32>
    tpu.vector_store %arg11[%c0_8, %c0_9], %15 {strides = array<i32>} : memref<32x128xf32, #tpu.memory_space<vmem>>, vector<32x128xf32>,
    %c0_10 = arith.constant 0 : index
    %c0_11 = arith.constant 0 : index
    %17 = vector.load %arg7[%c0_10, %c0_11] : memref<128x640xf32, #tpu.memory_space<vmem>>, vector<128x640xf32>
    %c0_12 = arith.constant 0 : index
    %c0_13 = arith.constant 0 : index
    %18 = vector.load %arg8[%c0_12, %c0_13] : memref<128x640xf32, #tpu.memory_space<vmem>>, vector<128x640xf32>
    %c0_14 = arith.constant 0 : index
    %c0_15 = arith.constant 0 : index
    %19 = vector.load %arg9[%c0_14, %c0_15] : memref<1x640xf32, #tpu.memory_space<vmem>>, vector<1x640xf32>
    %20 = tpu.iota {dimensions = array<i32: 0>} : vector<2x32xi32>
    %21 = tpu.iota {dimensions = array<i32: 1>} : vector<2x32xi32>
    %c0_i32 = arith.constant 0 : i32
    %c10_i32 = arith.constant 10 : i32
    %22 = arith.addi %c0_i32, %c10_i32 : i32
    %c1_i32 = arith.constant 1 : i32
    scf.for %arg13 = %c0_i32 to %22 step %c1_i32  : i32 {
      %c0_i32_24 = arith.constant 0 : i32
      %31 = vector.broadcast %c0_i32_24 : i32 to vector<2x32xi32>
      %c0_i32_25 = arith.constant 0 : i32
      %32 = vector.broadcast %c0_i32_25 : i32 to vector<2x32xi32>
      %33 = arith.cmpi eq, %20, %32 : vector<2x32xi32>
      %c2_i32 = arith.constant 2 : i32
      %34 = arith.muli %arg13, %c2_i32 : i32
      %c0_i32_26 = arith.constant 0 : i32
      %35 = arith.addi %34, %c0_i32_26 : i32
      %36 = arith.index_cast %35 : i32 to index
      %37 = memref.load %arg0[%36] : memref<20xi32, #tpu.memory_space<smem>>
      %38 = vector.broadcast %37 : i32 to vector<2x32xi32>
      %39 = arith.select %33, %38, %31 : vector<2x32xi1>, vector<2x32xi32>
      %c1_i32_27 = arith.constant 1 : i32
      %40 = vector.broadcast %c1_i32_27 : i32 to vector<2x32xi32>
      %41 = arith.cmpi eq, %20, %40 : vector<2x32xi32>
      %c2_i32_28 = arith.constant 2 : i32
      %42 = arith.muli %arg13, %c2_i32_28 : i32
      %c1_i32_29 = arith.constant 1 : i32
      %43 = arith.addi %42, %c1_i32_29 : i32
      %44 = arith.index_cast %43 : i32 to index
      %45 = memref.load %arg0[%44] : memref<20xi32, #tpu.memory_space<smem>>
      %46 = vector.broadcast %45 : i32 to vector<2x32xi32>
      %47 = arith.select %41, %46, %39 : vector<2x32xi1>, vector<2x32xi32>
      %48 = arith.cmpi eq, %21, %47 : vector<2x32xi32>
      %49 = arith.extui %48 : vector<2x32xi1> to vector<2x32xi32>
      %50 = arith.sitofp %49 : vector<2x32xi32> to vector<2x32xf32>
      %c0_i32_30 = arith.constant 0 : i32
      %51 = vector.broadcast %c0_i32_30 : i32 to vector<2x32xi32>
      %c0_i32_31 = arith.constant 0 : i32
      %52 = vector.broadcast %c0_i32_31 : i32 to vector<2x32xi32>
      %53 = arith.cmpi eq, %20, %52 : vector<2x32xi32>
      %c2_i32_32 = arith.constant 2 : i32
      %54 = arith.muli %arg13, %c2_i32_32 : i32
      %c0_i32_33 = arith.constant 0 : i32
      %55 = arith.addi %54, %c0_i32_33 : i32
      %56 = arith.index_cast %55 : i32 to index
      %57 = memref.load %arg1[%56] : memref<20xi32, #tpu.memory_space<smem>>
      %58 = vector.broadcast %57 : i32 to vector<2x32xi32>
      %59 = arith.select %53, %58, %51 : vector<2x32xi1>, vector<2x32xi32>
      %c1_i32_34 = arith.constant 1 : i32
      %60 = vector.broadcast %c1_i32_34 : i32 to vector<2x32xi32>
      %61 = arith.cmpi eq, %20, %60 : vector<2x32xi32>
      %c2_i32_35 = arith.constant 2 : i32
      %62 = arith.muli %arg13, %c2_i32_35 : i32
      %c1_i32_36 = arith.constant 1 : i32
      %63 = arith.addi %62, %c1_i32_36 : i32
      %64 = arith.index_cast %63 : i32 to index
      %65 = memref.load %arg1[%64] : memref<20xi32, #tpu.memory_space<smem>>
      %66 = vector.broadcast %65 : i32 to vector<2x32xi32>
      %67 = arith.select %61, %66, %59 : vector<2x32xi1>, vector<2x32xi32>
      %68 = arith.cmpi eq, %21, %67 : vector<2x32xi32>
      %69 = arith.extui %68 : vector<2x32xi1> to vector<2x32xi32>
      %70 = arith.sitofp %69 : vector<2x32xi32> to vector<2x32xf32>
      %c0_37 = arith.constant 0 : index
      %c0_38 = arith.constant 0 : index
      %71 = vector.load %arg11[%c0_37, %c0_38] : memref<32x128xf32, #tpu.memory_space<vmem>>, vector<32x128xf32>
      %c0_39 = arith.constant 0 : index
      %c0_40 = arith.constant 0 : index
      %72 = vector.load %arg12[%c0_39, %c0_40] : memref<32x128xf32, #tpu.memory_space<vmem>>, vector<32x128xf32>
      %cst_41 = arith.constant dense<0.000000e+00> : vector<2x128xf32>
      %73 = tpu.matmul %50, %71, %cst_41 {dimension_numbers = #tpu.dot_dimension_numbers<[1], [0], [0], [1], [0, 0, 1, 1], [], []>} : vector<2x32xf32>, vector<32x128xf32>, vector<2x128xf32> -> vector<2x128xf32>
      %cst_42 = arith.constant dense<0.000000e+00> : vector<2x128xf32>
      %74 = tpu.matmul %50, %72, %cst_42 {dimension_numbers = #tpu.dot_dimension_numbers<[1], [0], [0], [1], [0, 0, 1, 1], [], []>} : vector<2x32xf32>, vector<32x128xf32>, vector<2x128xf32> -> vector<2x128xf32>
      %cst_43 = arith.constant dense<0.000000e+00> : vector<2x128xf32>
      %75 = tpu.matmul %70, %71, %cst_43 {dimension_numbers = #tpu.dot_dimension_numbers<[1], [0], [0], [1], [0, 0, 1, 1], [], []>} : vector<2x32xf32>, vector<32x128xf32>, vector<2x128xf32> -> vector<2x128xf32>
      %cst_44 = arith.constant dense<0.000000e+00> : vector<2x128xf32>
      %76 = tpu.matmul %70, %72, %cst_44 {dimension_numbers = #tpu.dot_dimension_numbers<[1], [0], [0], [1], [0, 0, 1, 1], [], []>} : vector<2x32xf32>, vector<32x128xf32>, vector<2x128xf32> -> vector<2x128xf32>
      %cst_45 = arith.constant dense<0.000000e+00> : vector<2x640xf32>
      %77 = tpu.matmul %73, %17, %cst_45 {dimension_numbers = #tpu.dot_dimension_numbers<[1], [0], [0], [1], [0, 0, 1, 1], [], []>} : vector<2x128xf32>, vector<128x640xf32>, vector<2x640xf32> -> vector<2x640xf32>
      %cst_46 = arith.constant dense<0.000000e+00> : vector<2x640xf32>
      %78 = tpu.matmul %75, %18, %cst_46 {dimension_numbers = #tpu.dot_dimension_numbers<[1], [0], [0], [1], [0, 0, 1, 1], [], []>} : vector<2x128xf32>, vector<128x640xf32>, vector<2x640xf32> -> vector<2x640xf32>
      %79 = arith.addf %77, %78 : vector<2x640xf32>
      %80 = vector.broadcast %19 : vector<1x640xf32> to vector<2x640xf32>
      %81 = arith.addf %79, %80 : vector<2x640xf32>
      %82 = vector.extract_strided_slice %81 {offsets = [0, 0], sizes = [2, 128], strides = [1, 1]} : vector<2x640xf32> to vector<2x128xf32>
      %83 = arith.negf %82 : vector<2x128xf32>
      %84 = math.exp %83 : vector<2x128xf32>
      %cst_47 = arith.constant 1.000000e+00 : f32
      %85 = vector.broadcast %cst_47 : f32 to vector<2x128xf32>
      %86 = arith.addf %85, %84 : vector<2x128xf32>
      %87 = arith.divf %85, %86 : vector<2x128xf32>
      %88 = vector.extract_strided_slice %81 {offsets = [0, 128], sizes = [2, 128], strides = [1, 1]} : vector<2x640xf32> to vector<2x128xf32>
      %89 = arith.negf %88 : vector<2x128xf32>
      %90 = math.exp %89 : vector<2x128xf32>
      %cst_48 = arith.constant 1.000000e+00 : f32
      %91 = vector.broadcast %cst_48 : f32 to vector<2x128xf32>
      %92 = arith.addf %91, %90 : vector<2x128xf32>
      %93 = arith.divf %91, %92 : vector<2x128xf32>
      %94 = vector.extract_strided_slice %81 {offsets = [0, 256], sizes = [2, 128], strides = [1, 1]} : vector<2x640xf32> to vector<2x128xf32>
      %95 = arith.negf %94 : vector<2x128xf32>
      %96 = math.exp %95 : vector<2x128xf32>
      %cst_49 = arith.constant 1.000000e+00 : f32
      %97 = vector.broadcast %cst_49 : f32 to vector<2x128xf32>
      %98 = arith.addf %97, %96 : vector<2x128xf32>
      %99 = arith.divf %97, %98 : vector<2x128xf32>
      %100 = vector.extract_strided_slice %81 {offsets = [0, 384], sizes = [2, 128], strides = [1, 1]} : vector<2x640xf32> to vector<2x128xf32>
      %101 = math.tanh %100 : vector<2x128xf32>
      %102 = vector.extract_strided_slice %81 {offsets = [0, 512], sizes = [2, 128], strides = [1, 1]} : vector<2x640xf32> to vector<2x128xf32>
      %103 = arith.negf %102 : vector<2x128xf32>
      %104 = math.exp %103 : vector<2x128xf32>
      %cst_50 = arith.constant 1.000000e+00 : f32
      %105 = vector.broadcast %cst_50 : f32 to vector<2x128xf32>
      %106 = arith.addf %105, %104 : vector<2x128xf32>
      %107 = arith.divf %105, %106 : vector<2x128xf32>
      %108 = arith.mulf %87, %101 : vector<2x128xf32>
      %109 = arith.mulf %93, %74 : vector<2x128xf32>
      %110 = arith.addf %108, %109 : vector<2x128xf32>
      %111 = arith.mulf %99, %76 : vector<2x128xf32>
      %112 = arith.addf %110, %111 : vector<2x128xf32>
      %113 = math.tanh %112 : vector<2x128xf32>
      %114 = arith.mulf %107, %113 : vector<2x128xf32>
      %c2_i32_51 = arith.constant 2 : i32
      %115 = arith.muli %arg13, %c2_i32_51 : i32
      %c0_i32_52 = arith.constant 0 : i32
      %116 = arith.addi %115, %c0_i32_52 : i32
      %117 = arith.index_cast %116 : i32 to index
      %118 = memref.load %arg2[%117] : memref<20xi32, #tpu.memory_space<smem>>
      %c15_i32 = arith.constant 15 : i32
      %119 = arith.cmpi ne, %118, %c15_i32 : i32
      %120 = arith.extui %119 : i1 to i32
      %c0_i32_53 = arith.constant 0 : i32
      %121 = arith.cmpi ne, %120, %c0_i32_53 : i32
      scf.if %121 {
        %129 = vector.extract_strided_slice %114 {offsets = [0, 0], sizes = [1, 128], strides = [1, 1]} : vector<2x128xf32> to vector<1x128xf32>
        %130 = arith.index_cast %118 : i32 to index
        %c0_57 = arith.constant 0 : index
        %131 = vector.load %arg11[%130, %c0_57] : memref<32x128xf32, #tpu.memory_space<vmem>>, vector<1x128xf32>
        tpu.vector_store %arg11[%130, %c0_57], %129 {strides = array<i32>} : memref<32x128xf32, #tpu.memory_space<vmem>>, vector<1x128xf32>,
        %132 = vector.extract_strided_slice %112 {offsets = [0, 0], sizes = [1, 128], strides = [1, 1]} : vector<2x128xf32> to vector<1x128xf32>
        %133 = arith.index_cast %118 : i32 to index
        %c0_58 = arith.constant 0 : index
        %134 = vector.load %arg12[%133, %c0_58] : memref<32x128xf32, #tpu.memory_space<vmem>>, vector<1x128xf32>
        tpu.vector_store %arg12[%133, %c0_58], %132 {strides = array<i32>} : memref<32x128xf32, #tpu.memory_space<vmem>>, vector<1x128xf32>,
      } else {
      }
      %c2_i32_54 = arith.constant 2 : i32
      %122 = arith.muli %arg13, %c2_i32_54 : i32
      %c1_i32_55 = arith.constant 1 : i32
      %123 = arith.addi %122, %c1_i32_55 : i32
      %124 = arith.index_cast %123 : i32 to index
      %125 = memref.load %arg2[%124] : memref<20xi32, #tpu.memory_space<smem>>
      %c31_i32 = arith.constant 31 : i32
      %126 = arith.cmpi ne, %125, %c31_i32 : i32
      %127 = arith.extui %126 : i1 to i32
      %c0_i32_56 = arith.constant 0 : i32
      %128 = arith.cmpi ne, %127, %c0_i32_56 : i32
      scf.if %128 {
        %129 = vector.extract_strided_slice %114 {offsets = [1, 0], sizes = [1, 128], strides = [1, 1]} : vector<2x128xf32> to vector<1x128xf32>
        %130 = arith.index_cast %125 : i32 to index
        %c0_57 = arith.constant 0 : index
        %131 = vector.load %arg11[%130, %c0_57] : memref<32x128xf32, #tpu.memory_space<vmem>>, vector<1x128xf32>
        tpu.vector_store %arg11[%130, %c0_57], %129 {strides = array<i32>} : memref<32x128xf32, #tpu.memory_space<vmem>>, vector<1x128xf32>,
        %132 = vector.extract_strided_slice %112 {offsets = [1, 0], sizes = [1, 128], strides = [1, 1]} : vector<2x128xf32> to vector<1x128xf32>
        %133 = arith.index_cast %125 : i32 to index
        %c0_58 = arith.constant 0 : index
        %134 = vector.load %arg12[%133, %c0_58] : memref<32x128xf32, #tpu.memory_space<vmem>>, vector<1x128xf32>
        tpu.vector_store %arg12[%133, %c0_58], %132 {strides = array<i32>} : memref<32x128xf32, #tpu.memory_space<vmem>>, vector<1x128xf32>,
      } else {
      }
    }
    %c10_i32_16 = arith.constant 10 : i32
    %c0_17 = arith.constant 0 : index
    %23 = memref.load %arg3[%c0_17] : memref<2xi32, #tpu.memory_space<smem>>
    %24 = arith.index_cast %23 : i32 to index
    %c0_18 = arith.constant 0 : index
    %25 = vector.load %arg11[%24, %c0_18] : memref<32x128xf32, #tpu.memory_space<vmem>>, vector<1x128xf32>
    %c0_19 = arith.constant 0 : index
    %c0_20 = arith.constant 0 : index
    %26 = vector.load %arg10[%c0_19, %c0_20] : memref<2x128xf32, #tpu.memory_space<vmem>>, vector<1x128xf32>
    tpu.vector_store %arg10[%c0_19, %c0_20], %25 {strides = array<i32>} : memref<2x128xf32, #tpu.memory_space<vmem>>, vector<1x128xf32>,
    %c1 = arith.constant 1 : index
    %27 = memref.load %arg3[%c1] : memref<2xi32, #tpu.memory_space<smem>>
    %28 = arith.index_cast %27 : i32 to index
    %c0_21 = arith.constant 0 : index
    %29 = vector.load %arg11[%28, %c0_21] : memref<32x128xf32, #tpu.memory_space<vmem>>, vector<1x128xf32>
    %c1_22 = arith.constant 1 : index
    %c0_23 = arith.constant 0 : index
    %30 = vector.load %arg10[%c1_22, %c0_23] : memref<2x128xf32, #tpu.memory_space<vmem>>, vector<1x128xf32>
    tpu.vector_store %arg10[%c1_22, %c0_23], %29 {strides = array<i32>} : memref<2x128xf32, #tpu.memory_space<vmem>>, vector<1x128xf32>,
    return
  }
}

</mosaic_0001>

<llo_original>
// kernel: tpu_custom_call.1
$region0: #{tpu_custom_call.1}
  #allocation0 [shape = 'u32[]', space=smem, size = 0x4, offset = 0x4, fixed_abs, tag = 'smem constant byte address 0x4 - core index']
  #allocation1 [shape = 'u32[144,128]{1,0:T(1,128)}', space=vmem, size = 0x12000, scoped, tag = 'internal scratch']
  #allocation2 [shape = 'f32[32,128]{1,0:T(8,128)}', space=vmem, size = 0x4000, scoped, tag = 'scratch operand']
  #allocation3 [shape = 'f32[32,128]{1,0:T(8,128)}', space=vmem, size = 0x4000, scoped, tag = 'scratch operand']
  %s0 = inlined_call_operand.vmem [shape: s32[20], index: 0, kind: input, shape index: {}]
  %s1 = inlined_call_operand.vmem [shape: s32[20], index: 1, kind: input, shape index: {}]
  %s2 = inlined_call_operand.vmem [shape: s32[20], index: 2, kind: input, shape index: {}]
  %s3 = inlined_call_operand.vmem [shape: s32[2], index: 3, kind: input, shape index: {}]
  %s4 = inlined_call_operand.vmem [shape: f32[32,16], index: 4, kind: input, shape index: {}]
  %s5 = inlined_call_operand.vmem [shape: f32[16,256], index: 5, kind: input, shape index: {}]
  %s6 = inlined_call_operand.vmem [shape: f32[1,256], index: 6, kind: input, shape index: {}]
  %s7 = inlined_call_operand.hbm [shape: f32[128,640], index: 7, kind: input, shape index: {}]
  %s8 = inlined_call_operand.hbm [shape: f32[128,640], index: 8, kind: input, shape index: {}]
  %s9 = inlined_call_operand.vmem [shape: f32[1,640], index: 9, kind: input, shape index: {}]
  %s10 = inlined_call_operand.hbm [shape: f32[2,128], index: 10, kind: output, shape index: {}]
  %s11 = sld [smem:[#allocation0]]
  $region89: #{tpu_custom_call.1} parent=0
    _
  %s13 = ssub.s32 1, %s11
  %s14 = scalar_select 0, %s13, %s11
  $region1: #{tpu_custom_call.1} parent=0
    #allocation4 [shape = 'u8[512]{0}', space=smem, size = 0x200, scoped, tag = 'input window, operand 0, single buffered']
    #allocation5 [shape = 's32[1]{0}', space=sflag, size = 0x4, scoped, tag = 'scoped memory for tpu_custom_call.1']
    #allocation6 [shape = 's32[1]{0}', space=sflag, size = 0x4, scoped, tag = 'scoped memory for tpu_custom_call.1']
    #allocation7 [shape = 's32[1]{0}', space=sflag, size = 0x4, scoped, tag = 'scoped memory for tpu_custom_call.1']
    #allocation8 [shape = 'u8[512]{0}', space=smem, size = 0x200, scoped, tag = 'input window, operand 1, single buffered']
    #allocation9 [shape = 's32[1]{0}', space=sflag, size = 0x4, scoped, tag = 'scoped memory for tpu_custom_call.1']
    #allocation10 [shape = 'u8[512]{0}', space=smem, size = 0x200, scoped, tag = 'input window, operand 2, single buffered']
    #allocation11 [shape = 'u8[512]{0}', space=smem, size = 0x200, scoped, tag = 'input window, operand 3, single buffered']
    #allocation12 [shape = 's32[1]{0}', space=sflag, size = 0x4, scoped, tag = 'scoped memory for tpu_custom_call.1']
    #allocation13 [shape = 'u8[327680]{0}', space=vmem, size = 0x50000, scoped, tag = 'input window, operand 7, single buffered']
    #allocation14 [shape = 'u8[327680]{0}', space=vmem, size = 0x50000, scoped, tag = 'input window, operand 8, single buffered']
    #allocation15 [shape = 's32[1]{0}', space=sflag, size = 0x4, scoped, tag = 'scoped memory for tpu_custom_call.1']
    #allocation16 [shape = 'u8[1024]{0}', space=vmem, size = 0x400, scoped, tag = 'output window, operand 0, single buffered']
    %15 = vsyncpa [#allocation7], 0
    %16 = vsyncpa [#allocation9], 0
    %17 = vsyncpa [#allocation12], 0
    %18 = vsyncpa [#allocation5], 0
    %19 = vsyncpa [#allocation15], 0
    %20 = vsyncpa [#allocation6], 0
    // Predicated region
    $region2: #{tpu_custom_call.1} parent=1 // pred_check
      _
    $region3: #{tpu_custom_call.1} parent=1 // pred_check_branch
      %22 = sbr.rel (0) target = $region5
    $region4: #{tpu_custom_call.1} parent=1 // pred_region
      %s24 = ssub.s32 16, 16
      %25 = vsyncadd [#allocation7], %s24
      %s27 = sshll.u32 %s0, 4
      %s28 = int_to_ptr.vmem [resolvable:$true] %s27
      %30 = dma.vmem_to_smem %s28, 16, [#allocation4], [#allocation7]
    $region5: #{tpu_custom_call.1} parent=1 // pred_fallthru
      _
    // Predicated region
    $region6: #{tpu_custom_call.1} parent=1 // pred_check
      _
    $region7: #{tpu_custom_call.1} parent=1 // pred_check_branch
      %32 = sbr.rel (0) target = $region9
    $region8: #{tpu_custom_call.1} parent=1 // pred_region
      %s34 = ssub.s32 16, 16
      %35 = vsyncadd [#allocation9], %s34
      %s37 = sshll.u32 %s1, 4
      %s38 = int_to_ptr.vmem [resolvable:$true] %s37
      %40 = dma.vmem_to_smem %s38, 16, [#allocation8], [#allocation9]
    $region9: #{tpu_custom_call.1} parent=1 // pred_fallthru
      _
    // Predicated region
    $region10: #{tpu_custom_call.1} parent=1 // pred_check
      _
    $region11: #{tpu_custom_call.1} parent=1 // pred_check_branch
      %42 = sbr.rel (0) target = $region13
    $region12: #{tpu_custom_call.1} parent=1 // pred_region
      %s44 = ssub.s32 16, 16
      %45 = vsyncadd [#allocation9], %s44
      %s47 = sshll.u32 %s2, 4
      %s48 = int_to_ptr.vmem [resolvable:$true] %s47
      %50 = dma.vmem_to_smem %s48, 16, [#allocation10], [#allocation9]
    $region13: #{tpu_custom_call.1} parent=1 // pred_fallthru
      _
    // Predicated region
    $region14: #{tpu_custom_call.1} parent=1 // pred_check
      _
    $region15: #{tpu_custom_call.1} parent=1 // pred_check_branch
      %52 = sbr.rel (0) target = $region17
    $region16: #{tpu_custom_call.1} parent=1 // pred_region
      %s54 = ssub.s32 16, 16
      %55 = vsyncadd [#allocation12], %s54
      %s57 = sshll.u32 %s3, 4
      %s58 = int_to_ptr.vmem [resolvable:$true] %s57
      %60 = dma.vmem_to_smem %s58, 16, [#allocation11], [#allocation12]
    $region17: #{tpu_custom_call.1} parent=1 // pred_fallthru
      _
    // Predicated region
    $region18: #{tpu_custom_call.1} parent=1 // pred_check
      _
    $region19: #{tpu_custom_call.1} parent=1 // pred_check_branch
      %62 = sbr.rel (0) target = $region21
    $region20: #{tpu_custom_call.1} parent=1 // pred_region
      _
    $region21: #{tpu_custom_call.1} parent=1 // pred_fallthru
      _
    // Predicated region
    $region22: #{tpu_custom_call.1} parent=1 // pred_check
      _
    $region23: #{tpu_custom_call.1} parent=1 // pred_check_branch
      %64 = sbr.rel (0) target = $region25
    $region24: #{tpu_custom_call.1} parent=1 // pred_region
      _
    $region25: #{tpu_custom_call.1} parent=1 // pred_fallthru
      _
    // Predicated region
    $region26: #{tpu_custom_call.1} parent=1 // pred_check
      _
    $region27: #{tpu_custom_call.1} parent=1 // pred_check_branch
      %66 = sbr.rel (0) target = $region29
    $region28: #{tpu_custom_call.1} parent=1 // pred_region
      _
    $region29: #{tpu_custom_call.1} parent=1 // pred_fallthru
      _
    // Predicated region
    $region30: #{tpu_custom_call.1} parent=1 // pred_check
      _
    $region31: #{tpu_custom_call.1} parent=1 // pred_check_branch
      %68 = sbr.rel (0) target = $region33
    $region32: #{tpu_custom_call.1} parent=1 // pred_region
      %s70 = ssub.s32 10240, 10240
      %71 = vsyncadd [#allocation5], %s70
      %s72 = sshll.u32 [#allocation13], 4
      %s73 = int_to_ptr.vmem [resolvable:$true] %s72
      %78 = dma.hbm_to_vmem [thread:$0]  %s7, 10240, %s73, [#allocation5], 640, 640, 40
    $region33: #{tpu_custom_call.1} parent=1 // pred_fallthru
      _
    // Predicated region
    $region34: #{tpu_custom_call.1} parent=1 // pred_check
      _
    $region35: #{tpu_custom_call.1} parent=1 // pred_check_branch
      %80 = sbr.rel (0) target = $region37
    $region36: #{tpu_custom_call.1} parent=1 // pred_region
      %s82 = ssub.s32 10240, 10240
      %83 = vsyncadd [#allocation15], %s82
      %s84 = sshll.u32 [#allocation14], 4
      %s85 = int_to_ptr.vmem [resolvable:$true] %s84
      %90 = dma.hbm_to_vmem [thread:$0]  %s8, 10240, %s85, [#allocation15], 640, 640, 40
    $region37: #{tpu_custom_call.1} parent=1 // pred_fallthru
      _
    // Predicated region
    $region38: #{tpu_custom_call.1} parent=1 // pred_check
      _
    $region39: #{tpu_custom_call.1} parent=1 // pred_check_branch
      %92 = sbr.rel (0) target = $region41
    $region40: #{tpu_custom_call.1} parent=1 // pred_region
      _
    $region41: #{tpu_custom_call.1} parent=1 // pred_fallthru
      _
    // Predicated region
    $region42: #{tpu_custom_call.1} parent=1 // pred_check
      _
    $region43: #{tpu_custom_call.1} parent=1 // pred_check_branch
      %94 = sbr.rel (0) target = $region45
    $region44: #{tpu_custom_call.1} parent=1 // pred_region
      %95 = dma.done [#allocation7], 16
    $region45: #{tpu_custom_call.1} parent=1 // pred_fallthru
      _
    // Predicated region
    $region46: #{tpu_custom_call.1} parent=1 // pred_check
      _
    $region47: #{tpu_custom_call.1} parent=1 // pred_check_branch
      %97 = sbr.rel (0) target = $region49
    $region48: #{tpu_custom_call.1} parent=1 // pred_region
      %98 = dma.done [#allocation9], 16
    $region49: #{tpu_custom_call.1} parent=1 // pred_fallthru
      _
    // Predicated region
    $region50: #{tpu_custom_call.1} parent=1 // pred_check
      _
    $region51: #{tpu_custom_call.1} parent=1 // pred_check_branch
      %100 = sbr.rel (0) target = $region53
    $region52: #{tpu_custom_call.1} parent=1 // pred_region
      %101 = dma.done [#allocation9], 16
    $region53: #{tpu_custom_call.1} parent=1 // pred_fallthru
      _
    // Predicated region
    $region54: #{tpu_custom_call.1} parent=1 // pred_check
      _
    $region55: #{tpu_custom_call.1} parent=1 // pred_check_branch
      %103 = sbr.rel (0) target = $region57
    $region56: #{tpu_custom_call.1} parent=1 // pred_region
      %104 = dma.done [#allocation12], 16
    $region57: #{tpu_custom_call.1} parent=1 // pred_fallthru
      _
    // Predicated region
    $region58: #{tpu_custom_call.1} parent=1 // pred_check
      _
    $region59: #{tpu_custom_call.1} parent=1 // pred_check_branch
      %106 = sbr.rel (0) target = $region61
    $region60: #{tpu_custom_call.1} parent=1 // pred_region
      %107 = dma.done [#allocation5], 10240
    $region61: #{tpu_custom_call.1} parent=1 // pred_fallthru
      _
    // Predicated region
    $region62: #{tpu_custom_call.1} parent=1 // pred_check
      _
    $region63: #{tpu_custom_call.1} parent=1 // pred_check_branch
      %109 = sbr.rel (0) target = $region65
    $region64: #{tpu_custom_call.1} parent=1 // pred_region
      %110 = dma.done [#allocation15], 10240
    $region65: #{tpu_custom_call.1} parent=1 // pred_fallthru
      _
    %111 = sfence
    %v112 = vld [vmem:[%s4] sm:$0xff]
    %v113 = vld [vmem:[%s4 + $0x8] sm:$0xff]
    %v114 = vld [vmem:[%s4 + $0x10] sm:$0xff]
    %v115 = vld [vmem:[%s4 + $0x18] sm:$0xff]
    %v116 = vld [vmem:[%s5] sm:$0xff]
    %v117 = vld [vmem:[%s5 + $0x8] sm:$0xff]
    %v118 = vld [vmem:[%s5 + $0x10] sm:$0xff]
    %v119 = vld [vmem:[%s5 + $0x18] sm:$0xff]
    %v120 = vld [vmem:[%s6] sm:$0x3]
    %v122 = vlaneseq
    %v123 = vshrl.u32 %v122, 7
    %v124 = vsub.s32 0, %v123
    %v125 = vrot.slane %v120, %v124
    %v126 = vlaneseq
    %v127 = vshrl.u32 %v126, 7
    %v128 = vsub.s32 1, %v127
    %v129 = vrot.slane %v120, %v128
    %vm132 = vcmask 130048
    %v134 = vsel %vm132, %v112, 0
    %v137 = vsel %vm132, %v113, 0
    %v140 = vsel %vm132, %v114, 0
    %v143 = vsel %vm132, %v115, 0
    %145 = vmatprep.subr.mxu0 %v117
    %146 = vmatpush1.msra.mxu0 %v116
    %147 = vmatprep.subr.mxu0 %v119
    %148 = vmatpush1.msra.mxu0 %v118
    %149 = vmatprep.subr.mxu0 0.0
    %150 = vmatpush1.msra.mxu0 0.0
    %151 = vmatprep.subr.mxu0 0.0
    %152 = vmatpush1.msra.mxu0 0.0
    %153 = vmatprep.subr.mxu0 0.0
    %154 = vmatpush1.msra.mxu0 0.0
    %155 = vmatprep.subr.mxu0 0.0
    %156 = vmatpush1.msra.mxu0 0.0
    %157 = vmatprep.subr.mxu0 0.0
    %158 = vmatpush1.msra.mxu0 0.0
    %159 = vmatprep.subr.mxu0 0.0
    %160 = vmatpush1.msra.mxu0 0.0
    %161 = vmatprep.subr.mxu0 0.0
    %162 = vmatpush1.msra.mxu0 0.0
    %163 = vmatprep.subr.mxu0 0.0
    %164 = vmatpush1.msra.mxu0 0.0
    %165 = vmatprep.subr.mxu0 0.0
    %166 = vmatpush1.msra.mxu0 0.0
    %167 = vmatprep.subr.mxu0 0.0
    %168 = vmatpush1.msra.mxu0 0.0
    %169 = vmatprep.subr.mxu0 0.0
    %170 = vmatpush1.msra.mxu0 0.0
    %171 = vmatprep.subr.mxu0 0.0
    %172 = vmatpush1.msra.mxu0 0.0
    %173 = vmatprep.subr.mxu0 0.0
    %174 = vmatpush1.msra.mxu0 0.0
    %175 = vmatprep.subr.mxu0 0.0
    %176 = vmatpush1.msra.mxu0 0.0
    %177 = vmatprep.subr.mxu0 0.0
    %178 = vmatpush1.msra.mxu0 0.0
    %179 = vmatprep.subr.mxu0 0.0
    %180 = vmatpush1.msra.mxu0 0.0
    %181 = vmatprep.subr.mxu0 0.0
    %182 = vmatpush1.msra.mxu0 0.0
    %183 = vmatprep.subr.mxu0 0.0
    %184 = vmatpush1.msra.mxu0 0.0
    %185 = vmatprep.subr.mxu0 0.0
    %186 = vmatpush1.msra.mxu0 0.0
    %187 = vmatprep.subr.mxu0 0.0
    %188 = vmatpush1.msra.mxu0 0.0
    %189 = vmatprep.subr.mxu0 0.0
    %190 = vmatpush1.msra.mxu0 0.0
    %191 = vmatprep.subr.mxu0 0.0
    %192 = vmatpush1.msra.mxu0 0.0
    %193 = vmatprep.subr.mxu0 0.0
    %194 = vmatpush1.msra.mxu0 0.0
    %195 = vmatprep.subr.mxu0 0.0
    %196 = vmatpush1.msra.mxu0 0.0
    %197 = vmatprep.subr.mxu0 0.0
    %198 = vmatpush1.msra.mxu0 0.0
    %199 = vmatprep.subr.mxu0 0.0
    %200 = vmatpush1.msra.mxu0 0.0
    %201 = vmatprep.subr.mxu0 0.0
    %202 = vmatpush1.msra.mxu0 0.0
    %203 = vmatprep.subr.mxu0 0.0
    %204 = vmatpush1.msra.mxu0 0.0
    %205 = vmatprep.subr.mxu0 0.0
    %206 = vmatpush1.msra.mxu0 0.0
    %207 = vmatprep.subr.mxu0 0.0
    %208 = vmatpush1.msra.mxu0 0.0
    %209 = vmatprep.mubr.f32.mxu0 0.0
    %210 = vmatmul.mubr.f32.gmra.mrb[0].mxu0 %v134
    %v211 = vpop.f32.mrb[0].mxu0
    %v212 = vadd.f32 %v125, %v211
    %v213 = vpop.f32.mrb[0].mxu0
    %v214 = vadd.f32 %v129, %v213
    %215 = vmatprep.mubr.f32.mxu0 0.0
    %216 = vmatmul.mubr.f32.gmra.mrb[0].mxu0 %v137
    %v217 = vpop.f32.mrb[0].mxu0
    %v218 = vadd.f32 %v125, %v217
    %v219 = vpop.f32.mrb[0].mxu0
    %v220 = vadd.f32 %v129, %v219
    %221 = vmatprep.mubr.f32.mxu0 0.0
    %222 = vmatmul.mubr.f32.gmra.mrb[0].mxu0 %v140
    %v223 = vpop.f32.mrb[0].mxu0
    %v224 = vadd.f32 %v125, %v223
    %v225 = vpop.f32.mrb[0].mxu0
    %v226 = vadd.f32 %v129, %v225
    %227 = vmatprep.mubr.f32.mxu0 0.0
    %228 = vmatmul.mubr.f32.gmra.mrb[0].mxu0 %v143
    %v229 = vpop.f32.mrb[0].mxu0
    %v230 = vadd.f32 %v125, %v229
    %v231 = vpop.f32.mrb[0].mxu0
    %v232 = vadd.f32 %v129, %v231
    %233 = vdwg.mxu0
    %v234 = vxor.u32 %v214, 2147483648
    %v235 = vxor.u32 %v220, 2147483648
    %v236 = vxor.u32 %v226, 2147483648
    %v237 = vxor.u32 %v232, 2147483648
    %v238 = vmul.f32 %v234, 1.442695
    %v239 = vpow.pop %v238
    %v240 = vmul.f32 %v235, 1.442695
    %v241 = vpow.pop %v240
    %v242 = vmul.f32 %v236, 1.442695
    %v243 = vpow.pop %v242
    %v244 = vmul.f32 %v237, 1.442695
    %v245 = vpow.pop %v244
    %v246 = vadd.f32 %v239, 1.0
    %v247 = vadd.f32 %v241, 1.0
    %v248 = vadd.f32 %v243, 1.0
    %v249 = vadd.f32 %v245, 1.0
    %v250 = vrcp.pop %v246
    %v251 = vmul.f32 1.0, %v250
    %v252 = vrcp.pop %v247
    %v253 = vmul.f32 1.0, %v252
    %v254 = vrcp.pop %v248
    %v255 = vmul.f32 1.0, %v254
    %v256 = vrcp.pop %v249
    %v257 = vmul.f32 1.0, %v256
    %258 = vst [vmem:[#allocation3] sm:$0xff] %v212
    %259 = vst [vmem:[#allocation3 + $0x8] sm:$0xff] %v218
    %260 = vst [vmem:[#allocation3 + $0x10] sm:$0xff] %v224
    %261 = vst [vmem:[#allocation3 + $0x18] sm:$0xff] %v230
    %v262 = vtanh.pop %v212
    %v263 = vtanh.pop %v218
    %v264 = vtanh.pop %v224
    %v265 = vtanh.pop %v230
    %v266 = vmul.f32 %v251, %v262
    %v267 = vmul.f32 %v253, %v263
    %v268 = vmul.f32 %v255, %v264
    %v269 = vmul.f32 %v257, %v265
    %270 = vst [vmem:[#allocation2] sm:$0xff] %v266
    %271 = vst [vmem:[#allocation2 + $0x8] sm:$0xff] %v267
    %272 = vst [vmem:[#allocation2 + $0x10] sm:$0xff] %v268
    %273 = vst [vmem:[#allocation2 + $0x18] sm:$0xff] %v269
    %v274 = vld [vmem:[#allocation13] sm:$0xff]
    %v275 = vld [vmem:[#allocation13 + $0x8] sm:$0xff]
    %v276 = vld [vmem:[#allocation13 + $0x10] sm:$0xff]
    %v277 = vld [vmem:[#allocation13 + $0x18] sm:$0xff]
    %v278 = vld [vmem:[#allocation13 + $0x20] sm:$0xff]
    %v279 = vld [vmem:[#allocation13 + $0x28] sm:$0xff]
    %v280 = vld [vmem:[#allocation13 + $0x30] sm:$0xff]
    %v281 = vld [vmem:[#allocation13 + $0x38] sm:$0xff]
    %v282 = vld [vmem:[#allocation13 + $0x40] sm:$0xff]
    %v283 = vld [vmem:[#allocation13 + $0x48] sm:$0xff]
    %v284 = vld [vmem:[#allocation13 + $0x50] sm:$0xff]
    %v285 = vld [vmem:[#allocation13 + $0x58] sm:$0xff]
    %v286 = vld [vmem:[#allocation13 + $0x60] sm:$0xff]
    %v287 = vld [vmem:[#allocation13 + $0x68] sm:$0xff]
    %v288 = vld [vmem:[#allocation13 + $0x70] sm:$0xff]
    %v289 = vld [vmem:[#allocation13 + $0x78] sm:$0xff]
    %v290 = vld [vmem:[#allocation13 + $0x80] sm:$0xff]
    %v291 = vld [vmem:[#allocation13 + $0x88] sm:$0xff]
    %v292 = vld [vmem:[#allocation13 + $0x90] sm:$0xff]
    %v293 = vld [vmem:[#allocation13 + $0x98] sm:$0xff]
    %v294 = vld [vmem:[#allocation13 + $0xa0] sm:$0xff]
    %v295 = vld [vmem:[#allocation13 + $0xa8] sm:$0xff]
    %v296 = vld [vmem:[#allocation13 + $0xb0] sm:$0xff]
    %v297 = vld [vmem:[#allocation13 + $0xb8] sm:$0xff]
    %v298 = vld [vmem:[#allocation13 + $0xc0] sm:$0xff]
    %v299 = vld [vmem:[#allocation13 + $0xc8] sm:$0xff]
    %v300 = vld [vmem:[#allocation13 + $0xd0] sm:$0xff]
    %v301 = vld [vmem:[#allocation13 + $0xd8] sm:$0xff]
    %v302 = vld [vmem:[#allocation13 + $0xe0] sm:$0xff]
    %v303 = vld [vmem:[#allocation13 + $0xe8] sm:$0xff]
    %v304 = vld [vmem:[#allocation13 + $0xf0] sm:$0xff]
    %v305 = vld [vmem:[#allocation13 + $0xf8] sm:$0xff]
    %v306 = vld [vmem:[#allocation13 + $0x100] sm:$0xff]
    %v307 = vld [vmem:[#allocation13 + $0x108] sm:$0xff]
    %v308 = vld [vmem:[#allocation13 + $0x110] sm:$0xff]
    %v309 = vld [vmem:[#allocation13 + $0x118] sm:$0xff]
    %v310 = vld [vmem:[#allocation13 + $0x120] sm:$0xff]
    %v311 = vld [vmem:[#allocation13 + $0x128] sm:$0xff]
    %v312 = vld [vmem:[#allocation13 + $0x130] sm:$0xff]
    %v313 = vld [vmem:[#allocation13 + $0x138] sm:$0xff]
    %v314 = vld [vmem:[#allocation13 + $0x140] sm:$0xff]
    %v315 = vld [vmem:[#allocation13 + $0x148] sm:$0xff]
    %v316 = vld [vmem:[#allocation13 + $0x150] sm:$0xff]
    %v317 = vld [vmem:[#allocation13 + $0x158] sm:$0xff]
    %v318 = vld [vmem:[#allocation13 + $0x160] sm:$0xff]
    %v319 = vld [vmem:[#allocation13 + $0x168] sm:$0xff]
    %v320 = vld [vmem:[#allocation13 + $0x170] sm:$0xff]
    %v321 = vld [vmem:[#allocation13 + $0x178] sm:$0xff]
    %v322 = vld [vmem:[#allocation13 + $0x180] sm:$0xff]
    %v323 = vld [vmem:[#allocation13 + $0x188] sm:$0xff]
    %v324 = vld [vmem:[#allocation13 + $0x190] sm:$0xff]
    %v325 = vld [vmem:[#allocation13 + $0x198] sm:$0xff]
    %v326 = vld [vmem:[#allocation13 + $0x1a0] sm:$0xff]
    %v327 = vld [vmem:[#allocation13 + $0x1a8] sm:$0xff]
    %v328 = vld [vmem:[#allocation13 + $0x1b0] sm:$0xff]
    %v329 = vld [vmem:[#allocation13 + $0x1b8] sm:$0xff]
    %v330 = vld [vmem:[#allocation13 + $0x1c0] sm:$0xff]
    %v331 = vld [vmem:[#allocation13 + $0x1c8] sm:$0xff]
    %v332 = vld [vmem:[#allocation13 + $0x1d0] sm:$0xff]
    %v333 = vld [vmem:[#allocation13 + $0x1d8] sm:$0xff]
    %v334 = vld [vmem:[#allocation13 + $0x1e0] sm:$0xff]
    %v335 = vld [vmem:[#allocation13 + $0x1e8] sm:$0xff]
    %v336 = vld [vmem:[#allocation13 + $0x1f0] sm:$0xff]
    %v337 = vld [vmem:[#allocation13 + $0x1f8] sm:$0xff]
    %v338 = vld [vmem:[#allocation13 + $0x200] sm:$0xff]
    %v339 = vld [vmem:[#allocation13 + $0x208] sm:$0xff]
    %v340 = vld [vmem:[#allocation13 + $0x210] sm:$0xff]
    %v341 = vld [vmem:[#allocation13 + $0x218] sm:$0xff]
    %v342 = vld [vmem:[#allocation13 + $0x220] sm:$0xff]
    %v343 = vld [vmem:[#allocation13 + $0x228] sm:$0xff]
    %v344 = vld [vmem:[#allocation13 + $0x230] sm:$0xff]
    %v345 = vld [vmem:[#allocation13 + $0x238] sm:$0xff]
    %v346 = vld [vmem:[#allocation13 + $0x240] sm:$0xff]
    %v347 = vld [vmem:[#allocation13 + $0x248] sm:$0xff]
    %v348 = vld [vmem:[#allocation13 + $0x250] sm:$0xff]
    %v349 = vld [vmem:[#allocation13 + $0x258] sm:$0xff]
    %v350 = vld [vmem:[#allocation13 + $0x260] sm:$0xff]
    %v351 = vld [vmem:[#allocation13 + $0x268] sm:$0xff]
    %v352 = vld [vmem:[#allocation13 + $0x270] sm:$0xff]
    %v353 = vld [vmem:[#allocation13 + $0x278] sm:$0xff]
    %v354 = vld [vmem:[#allocation14] sm:$0xff]
    %v355 = vld [vmem:[#allocation14 + $0x8] sm:$0xff]
    %v356 = vld [vmem:[#allocation14 + $0x10] sm:$0xff]
    %v357 = vld [vmem:[#allocation14 + $0x18] sm:$0xff]
    %v358 = vld [vmem:[#allocation14 + $0x20] sm:$0xff]
    %v359 = vld [vmem:[#allocation14 + $0x28] sm:$0xff]
    %v360 = vld [vmem:[#allocation14 + $0x30] sm:$0xff]
    %v361 = vld [vmem:[#allocation14 + $0x38] sm:$0xff]
    %v362 = vld [vmem:[#allocation14 + $0x40] sm:$0xff]
    %v363 = vld [vmem:[#allocation14 + $0x48] sm:$0xff]
    %v364 = vld [vmem:[#allocation14 + $0x50] sm:$0xff]
    %v365 = vld [vmem:[#allocation14 + $0x58] sm:$0xff]
    %v366 = vld [vmem:[#allocation14 + $0x60] sm:$0xff]
    %v367 = vld [vmem:[#allocation14 + $0x68] sm:$0xff]
    %v368 = vld [vmem:[#allocation14 + $0x70] sm:$0xff]
    %v369 = vld [vmem:[#allocation14 + $0x78] sm:$0xff]
    %v370 = vld [vmem:[#allocation14 + $0x80] sm:$0xff]
    %v371 = vld [vmem:[#allocation14 + $0x88] sm:$0xff]
    %v372 = vld [vmem:[#allocation14 + $0x90] sm:$0xff]
    %v373 = vld [vmem:[#allocation14 + $0x98] sm:$0xff]
    %v374 = vld [vmem:[#allocation14 + $0xa0] sm:$0xff]
    %v375 = vld [vmem:[#allocation14 + $0xa8] sm:$0xff]
    %v376 = vld [vmem:[#allocation14 + $0xb0] sm:$0xff]
    %v377 = vld [vmem:[#allocation14 + $0xb8] sm:$0xff]
    %v378 = vld [vmem:[#allocation14 + $0xc0] sm:$0xff]
    %v379 = vld [vmem:[#allocation14 + $0xc8] sm:$0xff]
    %v380 = vld [vmem:[#allocation14 + $0xd0] sm:$0xff]
    %v381 = vld [vmem:[#allocation14 + $0xd8] sm:$0xff]
    %v382 = vld [vmem:[#allocation14 + $0xe0] sm:$0xff]
    %v383 = vld [vmem:[#allocation14 + $0xe8] sm:$0xff]
    %v384 = vld [vmem:[#allocation14 + $0xf0] sm:$0xff]
    %v385 = vld [vmem:[#allocation14 + $0xf8] sm:$0xff]
    %v386 = vld [vmem:[#allocation14 + $0x100] sm:$0xff]
    %v387 = vld [vmem:[#allocation14 + $0x108] sm:$0xff]
    %v388 = vld [vmem:[#allocation14 + $0x110] sm:$0xff]
    %v389 = vld [vmem:[#allocation14 + $0x118] sm:$0xff]
    %v390 = vld [vmem:[#allocation14 + $0x120] sm:$0xff]
    %v391 = vld [vmem:[#allocation14 + $0x128] sm:$0xff]
    %v392 = vld [vmem:[#allocation14 + $0x130] sm:$0xff]
    %v393 = vld [vmem:[#allocation14 + $0x138] sm:$0xff]
    %v394 = vld [vmem:[#allocation14 + $0x140] sm:$0xff]
    %v395 = vld [vmem:[#allocation14 + $0x148] sm:$0xff]
    %v396 = vld [vmem:[#allocation14 + $0x150] sm:$0xff]
    %v397 = vld [vmem:[#allocation14 + $0x158] sm:$0xff]
    %v398 = vld [vmem:[#allocation14 + $0x160] sm:$0xff]
    %v399 = vld [vmem:[#allocation14 + $0x168] sm:$0xff]
    %v400 = vld [vmem:[#allocation14 + $0x170] sm:$0xff]
    %v401 = vld [vmem:[#allocation14 + $0x178] sm:$0xff]
    %v402 = vld [vmem:[#allocation14 + $0x180] sm:$0xff]
    %v403 = vld [vmem:[#allocation14 + $0x188] sm:$0xff]
    %v404 = vld [vmem:[#allocation14 + $0x190] sm:$0xff]
    %v405 = vld [vmem:[#allocation14 + $0x198] sm:$0xff]
    %v406 = vld [vmem:[#allocation14 + $0x1a0] sm:$0xff]
    %v407 = vld [vmem:[#allocation14 + $0x1a8] sm:$0xff]
    %v408 = vld [vmem:[#allocation14 + $0x1b0] sm:$0xff]
    %v409 = vld [vmem:[#allocation14 + $0x1b8] sm:$0xff]
    %v410 = vld [vmem:[#allocation14 + $0x1c0] sm:$0xff]
    %v411 = vld [vmem:[#allocation14 + $0x1c8] sm:$0xff]
    %v412 = vld [vmem:[#allocation14 + $0x1d0] sm:$0xff]
    %v413 = vld [vmem:[#allocation14 + $0x1d8] sm:$0xff]
    %v414 = vld [vmem:[#allocation14 + $0x1e0] sm:$0xff]
    %v415 = vld [vmem:[#allocation14 + $0x1e8] sm:$0xff]
    %v416 = vld [vmem:[#allocation14 + $0x1f0] sm:$0xff]
    %v417 = vld [vmem:[#allocation14 + $0x1f8] sm:$0xff]
    %v418 = vld [vmem:[#allocation14 + $0x200] sm:$0xff]
    %v419 = vld [vmem:[#allocation14 + $0x208] sm:$0xff]
    %v420 = vld [vmem:[#allocation14 + $0x210] sm:$0xff]
    %v421 = vld [vmem:[#allocation14 + $0x218] sm:$0xff]
    %v422 = vld [vmem:[#allocation14 + $0x220] sm:$0xff]
    %v423 = vld [vmem:[#allocation14 + $0x228] sm:$0xff]
    %v424 = vld [vmem:[#allocation14 + $0x230] sm:$0xff]
    %v425 = vld [vmem:[#allocation14 + $0x238] sm:$0xff]
    %v426 = vld [vmem:[#allocation14 + $0x240] sm:$0xff]
    %v427 = vld [vmem:[#allocation14 + $0x248] sm:$0xff]
    %v428 = vld [vmem:[#allocation14 + $0x250] sm:$0xff]
    %v429 = vld [vmem:[#allocation14 + $0x258] sm:$0xff]
    %v430 = vld [vmem:[#allocation14 + $0x260] sm:$0xff]
    %v431 = vld [vmem:[#allocation14 + $0x268] sm:$0xff]
    %v432 = vld [vmem:[#allocation14 + $0x270] sm:$0xff]
    %v433 = vld [vmem:[#allocation14 + $0x278] sm:$0xff]
    %v434 = vld [vmem:[%s9] sm:$0x1f]
    %v435 = vlaneseq
    %v436 = vshrl.u32 %v435, 7
    %v437 = vlaneseq
    %v438 = vand.u32 %v437, 127
    loop: start=0, step=1, limit=10
    $region66: #{tpu_custom_call.1} parent=1 // loop_pre_header
      _
    $region67: #{tpu_custom_call.1} parent=1 // loop_header
      %s440 = sphi 0, %s444
      %p441 = scmp.ge.s32.totalorder %s440, 10
    $region68: #{tpu_custom_call.1} parent=1 // loop_header_branch
      %443 = sbr.rel (%p441) target = $region72
    $region69: #{tpu_custom_call.1} parent=1 // loop_body
      %vm445 = vcmp.eq.s32.totalorder %v436, 0
      %s446 = smul.u32 %s440, 2
      %s447 = sld [smem:[#allocation4 + %s446]]
      %v448 = vstv %s447
      %v449 = vsel %vm445, %v448, 0
      %vm450 = vcmp.eq.s32.totalorder %v436, 1
      %s451 = sadd.s32 %s446, 1
      %s452 = sld [smem:[#allocation4 + %s451]]
      %v453 = vstv %s452
      %v454 = vsel %vm450, %v453, %v449
      %vm455 = vcmp.eq.s32.totalorder %v438, %v454
      %v456 = vsel %vm455, 1, 0
      %v457 = vcvt.s32.f32 %v456
      %s458 = sld [smem:[#allocation8 + %s446]]
      %v459 = vstv %s458
      %v460 = vsel %vm445, %v459, 0
      %s461 = sld [smem:[#allocation8 + %s451]]
      %v462 = vstv %s461
      %v463 = vsel %vm450, %v462, %v460
      %vm464 = vcmp.eq.s32.totalorder %v438, %v463
      %v465 = vsel %vm464, 1, 0
      %v466 = vcvt.s32.f32 %v465
      %v467 = vld [vmem:[#allocation2] sm:$0xff]
      %v468 = vld [vmem:[#allocation2 + $0x8] sm:$0xff]
      %v469 = vld [vmem:[#allocation2 + $0x10] sm:$0xff]
      %v470 = vld [vmem:[#allocation2 + $0x18] sm:$0xff]
      %v471 = vld [vmem:[#allocation3] sm:$0xff]
      %v472 = vld [vmem:[#allocation3 + $0x8] sm:$0xff]
      %v473 = vld [vmem:[#allocation3 + $0x10] sm:$0xff]
      %v474 = vld [vmem:[#allocation3 + $0x18] sm:$0xff]
      %vm475 = vcmask 261120
      %v477 = vsel %vm475, %v457, 0
      %479 = vmatprep.subr.mxu0 0.0
      %480 = vmatpush1.msra.mxu0 %v467
      %481 = vmatprep.subr.mxu0 0.0
      %482 = vmatpush1.msra.mxu0 %v468
      %483 = vmatprep.subr.mxu0 0.0
      %484 = vmatpush1.msra.mxu0 %v469
      %485 = vmatprep.subr.mxu0 0.0
      %486 = vmatpush1.msra.mxu0 %v470
      %487 = vmatprep.subr.mxu0 0.0
      %488 = vmatpush1.msra.mxu0 0.0
      %489 = vmatprep.subr.mxu0 0.0
      %490 = vmatpush1.msra.mxu0 0.0
      %491 = vmatprep.subr.mxu0 0.0
      %492 = vmatpush1.msra.mxu0 0.0
      %493 = vmatprep.subr.mxu0 0.0
      %494 = vmatpush1.msra.mxu0 0.0
      %495 = vmatprep.subr.mxu0 0.0
      %496 = vmatpush1.msra.mxu0 0.0
      %497 = vmatprep.subr.mxu0 0.0
      %498 = vmatpush1.msra.mxu0 0.0
      %499 = vmatprep.subr.mxu0 0.0
      %500 = vmatpush1.msra.mxu0 0.0
      %501 = vmatprep.subr.mxu0 0.0
      %502 = vmatpush1.msra.mxu0 0.0
      %503 = vmatprep.subr.mxu0 0.0
      %504 = vmatpush1.msra.mxu0 0.0
      %505 = vmatprep.subr.mxu0 0.0
      %506 = vmatpush1.msra.mxu0 0.0
      %507 = vmatprep.subr.mxu0 0.0
      %508 = vmatpush1.msra.mxu0 0.0
      %509 = vmatprep.subr.mxu0 0.0
      %510 = vmatpush1.msra.mxu0 0.0
      %511 = vmatprep.subr.mxu0 0.0
      %512 = vmatpush1.msra.mxu0 0.0
      %513 = vmatprep.subr.mxu0 0.0
      %514 = vmatpush1.msra.mxu0 0.0
      %515 = vmatprep.subr.mxu0 0.0
      %516 = vmatpush1.msra.mxu0 0.0
      %517 = vmatprep.subr.mxu0 0.0
      %518 = vmatpush1.msra.mxu0 0.0
      %519 = vmatprep.subr.mxu0 0.0
      %520 = vmatpush1.msra.mxu0 0.0
      %521 = vmatprep.subr.mxu0 0.0
      %522 = vmatpush1.msra.mxu0 0.0
      %523 = vmatprep.subr.mxu0 0.0
      %524 = vmatpush1.msra.mxu0 0.0
      %525 = vmatprep.subr.mxu0 0.0
      %526 = vmatpush1.msra.mxu0 0.0
      %527 = vmatprep.subr.mxu0 0.0
      %528 = vmatpush1.msra.mxu0 0.0
      %529 = vmatprep.subr.mxu0 0.0
      %530 = vmatpush1.msra.mxu0 0.0
      %531 = vmatprep.subr.mxu0 0.0
      %532 = vmatpush1.msra.mxu0 0.0
      %533 = vmatprep.subr.mxu0 0.0
      %534 = vmatpush1.msra.mxu0 0.0
      %535 = vmatprep.subr.mxu0 0.0
      %536 = vmatpush1.msra.mxu0 0.0
      %537 = vmatprep.subr.mxu0 0.0
      %538 = vmatpush1.msra.mxu0 0.0
      %539 = vmatprep.subr.mxu0 0.0
      %540 = vmatpush1.msra.mxu0 0.0
      %541 = vmatprep.subr.mxu0 0.0
      %542 = vmatpush1.msra.mxu0 0.0
      %543 = vmatprep.mubr.f32.mxu0 0.0
      %544 = vmatmul.mubr.f32.gmra.mrb[0].mxu0 %v477
      %v545 = vpop.f32.mrb[0].mxu0
      %v546 = vadd.f32 0.0, %v545
      %v547 = vpop.f32.mrb[0].mxu0
      %548 = vdwg.mxu0
      %549 = vmatprep.subr.mxu0 0.0
      %550 = vmatpush1.msra.mxu0 %v471
      %551 = vmatprep.subr.mxu0 0.0
      %552 = vmatpush1.msra.mxu0 %v472
      %553 = vmatprep.subr.mxu0 0.0
      %554 = vmatpush1.msra.mxu0 %v473
      %555 = vmatprep.subr.mxu0 0.0
      %556 = vmatpush1.msra.mxu0 %v474
      %557 = vmatprep.subr.mxu0 0.0
      %558 = vmatpush1.msra.mxu0 0.0
      %559 = vmatprep.subr.mxu0 0.0
      %560 = vmatpush1.msra.mxu0 0.0
      %561 = vmatprep.subr.mxu0 0.0
      %562 = vmatpush1.msra.mxu0 0.0
      %563 = vmatprep.subr.mxu0 0.0
      %564 = vmatpush1.msra.mxu0 0.0
      %565 = vmatprep.subr.mxu0 0.0
      %566 = vmatpush1.msra.mxu0 0.0
      %567 = vmatprep.subr.mxu0 0.0
      %568 = vmatpush1.msra.mxu0 0.0
      %569 = vmatprep.subr.mxu0 0.0
      %570 = vmatpush1.msra.mxu0 0.0
      %571 = vmatprep.subr.mxu0 0.0
      %572 = vmatpush1.msra.mxu0 0.0
      %573 = vmatprep.subr.mxu0 0.0
      %574 = vmatpush1.msra.mxu0 0.0
      %575 = vmatprep.subr.mxu0 0.0
      %576 = vmatpush1.msra.mxu0 0.0
      %577 = vmatprep.subr.mxu0 0.0
      %578 = vmatpush1.msra.mxu0 0.0
      %579 = vmatprep.subr.mxu0 0.0
      %580 = vmatpush1.msra.mxu0 0.0
      %581 = vmatprep.subr.mxu0 0.0
      %582 = vmatpush1.msra.mxu0 0.0
      %583 = vmatprep.subr.mxu0 0.0
      %584 = vmatpush1.msra.mxu0 0.0
      %585 = vmatprep.subr.mxu0 0.0
      %586 = vmatpush1.msra.mxu0 0.0
      %587 = vmatprep.subr.mxu0 0.0
      %588 = vmatpush1.msra.mxu0 0.0
      %589 = vmatprep.subr.mxu0 0.0
      %590 = vmatpush1.msra.mxu0 0.0
      %591 = vmatprep.subr.mxu0 0.0
      %592 = vmatpush1.msra.mxu0 0.0
      %593 = vmatprep.subr.mxu0 0.0
      %594 = vmatpush1.msra.mxu0 0.0
      %595 = vmatprep.subr.mxu0 0.0
      %596 = vmatpush1.msra.mxu0 0.0
      %597 = vmatprep.subr.mxu0 0.0
      %598 = vmatpush1.msra.mxu0 0.0
      %599 = vmatprep.subr.mxu0 0.0
      %600 = vmatpush1.msra.mxu0 0.0
      %601 = vmatprep.subr.mxu0 0.0
      %602 = vmatpush1.msra.mxu0 0.0
      %603 = vmatprep.subr.mxu0 0.0
      %604 = vmatpush1.msra.mxu0 0.0
      %605 = vmatprep.subr.mxu0 0.0
      %606 = vmatpush1.msra.mxu0 0.0
      %607 = vmatprep.subr.mxu0 0.0
      %608 = vmatpush1.msra.mxu0 0.0
      %609 = vmatprep.subr.mxu0 0.0
      %610 = vmatpush1.msra.mxu0 0.0
      %611 = vmatprep.subr.mxu0 0.0
      %612 = vmatpush1.msra.mxu0 0.0
      %613 = vmatprep.mubr.f32.mxu0 0.0
      %614 = vmatmul.mubr.f32.gmra.mrb[0].mxu0 %v477
      %v615 = vpop.f32.mrb[0].mxu0
      %v616 = vadd.f32 0.0, %v615
      %v617 = vpop.f32.mrb[0].mxu0
      %618 = vdwg.mxu0
      %v620 = vsel %vm475, %v466, 0
      %622 = vmatprep.subr.mxu0 0.0
      %623 = vmatpush1.msra.mxu0 %v467
      %624 = vmatprep.subr.mxu0 0.0
      %625 = vmatpush1.msra.mxu0 %v468
      %626 = vmatprep.subr.mxu0 0.0
      %627 = vmatpush1.msra.mxu0 %v469
      %628 = vmatprep.subr.mxu0 0.0
      %629 = vmatpush1.msra.mxu0 %v470
      %630 = vmatprep.subr.mxu0 0.0
      %631 = vmatpush1.msra.mxu0 0.0
      %632 = vmatprep.subr.mxu0 0.0
      %633 = vmatpush1.msra.mxu0 0.0
      %634 = vmatprep.subr.mxu0 0.0
      %635 = vmatpush1.msra.mxu0 0.0
      %636 = vmatprep.subr.mxu0 0.0
      %637 = vmatpush1.msra.mxu0 0.0
      %638 = vmatprep.subr.mxu0 0.0
      %639 = vmatpush1.msra.mxu0 0.0
      %640 = vmatprep.subr.mxu0 0.0
      %641 = vmatpush1.msra.mxu0 0.0
      %642 = vmatprep.subr.mxu0 0.0
      %643 = vmatpush1.msra.mxu0 0.0
      %644 = vmatprep.subr.mxu0 0.0
      %645 = vmatpush1.msra.mxu0 0.0
      %646 = vmatprep.subr.mxu0 0.0
      %647 = vmatpush1.msra.mxu0 0.0
      %648 = vmatprep.subr.mxu0 0.0
      %649 = vmatpush1.msra.mxu0 0.0
      %650 = vmatprep.subr.mxu0 0.0
      %651 = vmatpush1.msra.mxu0 0.0
      %652 = vmatprep.subr.mxu0 0.0
      %653 = vmatpush1.msra.mxu0 0.0
      %654 = vmatprep.subr.mxu0 0.0
      %655 = vmatpush1.msra.mxu0 0.0
      %656 = vmatprep.subr.mxu0 0.0
      %657 = vmatpush1.msra.mxu0 0.0
      %658 = vmatprep.subr.mxu0 0.0
      %659 = vmatpush1.msra.mxu0 0.0
      %660 = vmatprep.subr.mxu0 0.0
      %661 = vmatpush1.msra.mxu0 0.0
      %662 = vmatprep.subr.mxu0 0.0
      %663 = vmatpush1.msra.mxu0 0.0
      %664 = vmatprep.subr.mxu0 0.0
      %665 = vmatpush1.msra.mxu0 0.0
      %666 = vmatprep.subr.mxu0 0.0
      %667 = vmatpush1.msra.mxu0 0.0
      %668 = vmatprep.subr.mxu0 0.0
      %669 = vmatpush1.msra.mxu0 0.0
      %670 = vmatprep.subr.mxu0 0.0
      %671 = vmatpush1.msra.mxu0 0.0
      %672 = vmatprep.subr.mxu0 0.0
      %673 = vmatpush1.msra.mxu0 0.0
      %674 = vmatprep.subr.mxu0 0.0
      %675 = vmatpush1.msra.mxu0 0.0
      %676 = vmatprep.subr.mxu0 0.0
      %677 = vmatpush1.msra.mxu0 0.0
      %678 = vmatprep.subr.mxu0 0.0
      %679 = vmatpush1.msra.mxu0 0.0
      %680 = vmatprep.subr.mxu0 0.0
      %681 = vmatpush1.msra.mxu0 0.0
      %682 = vmatprep.subr.mxu0 0.0
      %683 = vmatpush1.msra.mxu0 0.0
      %684 = vmatprep.subr.mxu0 0.0
      %685 = vmatpush1.msra.mxu0 0.0
      %686 = vmatprep.mubr.f32.mxu0 0.0
      %687 = vmatmul.mubr.f32.gmra.mrb[0].mxu0 %v620
      %v688 = vpop.f32.mrb[0].mxu0
      %v689 = vadd.f32 0.0, %v688
      %v690 = vpop.f32.mrb[0].mxu0
      %691 = vdwg.mxu0
      %692 = vmatprep.subr.mxu0 0.0
      %693 = vmatpush1.msra.mxu0 %v471
      %694 = vmatprep.subr.mxu0 0.0
      %695 = vmatpush1.msra.mxu0 %v472
      %696 = vmatprep.subr.mxu0 0.0
      %697 = vmatpush1.msra.mxu0 %v473
      %698 = vmatprep.subr.mxu0 0.0
      %699 = vmatpush1.msra.mxu0 %v474
      %700 = vmatprep.subr.mxu0 0.0
      %701 = vmatpush1.msra.mxu0 0.0
      %702 = vmatprep.subr.mxu0 0.0
      %703 = vmatpush1.msra.mxu0 0.0
      %704 = vmatprep.subr.mxu0 0.0
      %705 = vmatpush1.msra.mxu0 0.0
      %706 = vmatprep.subr.mxu0 0.0
      %707 = vmatpush1.msra.mxu0 0.0
      %708 = vmatprep.subr.mxu0 0.0
      %709 = vmatpush1.msra.mxu0 0.0
      %710 = vmatprep.subr.mxu0 0.0
      %711 = vmatpush1.msra.mxu0 0.0
      %712 = vmatprep.subr.mxu0 0.0
      %713 = vmatpush1.msra.mxu0 0.0
      %714 = vmatprep.subr.mxu0 0.0
      %715 = vmatpush1.msra.mxu0 0.0
      %716 = vmatprep.subr.mxu0 0.0
      %717 = vmatpush1.msra.mxu0 0.0
      %718 = vmatprep.subr.mxu0 0.0
      %719 = vmatpush1.msra.mxu0 0.0
      %720 = vmatprep.subr.mxu0 0.0
      %721 = vmatpush1.msra.mxu0 0.0
      %722 = vmatprep.subr.mxu0 0.0
      %723 = vmatpush1.msra.mxu0 0.0
      %724 = vmatprep.subr.mxu0 0.0
      %725 = vmatpush1.msra.mxu0 0.0
      %726 = vmatprep.subr.mxu0 0.0
      %727 = vmatpush1.msra.mxu0 0.0
      %728 = vmatprep.subr.mxu0 0.0
      %729 = vmatpush1.msra.mxu0 0.0
      %730 = vmatprep.subr.mxu0 0.0
      %731 = vmatpush1.msra.mxu0 0.0
      %732 = vmatprep.subr.mxu0 0.0
      %733 = vmatpush1.msra.mxu0 0.0
      %734 = vmatprep.subr.mxu0 0.0
      %735 = vmatpush1.msra.mxu0 0.0
      %736 = vmatprep.subr.mxu0 0.0
      %737 = vmatpush1.msra.mxu0 0.0
      %738 = vmatprep.subr.mxu0 0.0
      %739 = vmatpush1.msra.mxu0 0.0
      %740 = vmatprep.subr.mxu0 0.0
      %741 = vmatpush1.msra.mxu0 0.0
      %742 = vmatprep.subr.mxu0 0.0
      %743 = vmatpush1.msra.mxu0 0.0
      %744 = vmatprep.subr.mxu0 0.0
      %745 = vmatpush1.msra.mxu0 0.0
      %746 = vmatprep.subr.mxu0 0.0
      %747 = vmatpush1.msra.mxu0 0.0
      %748 = vmatprep.subr.mxu0 0.0
      %749 = vmatpush1.msra.mxu0 0.0
      %750 = vmatprep.subr.mxu0 0.0
      %751 = vmatpush1.msra.mxu0 0.0
      %752 = vmatprep.subr.mxu0 0.0
      %753 = vmatpush1.msra.mxu0 0.0
      %754 = vmatprep.subr.mxu0 0.0
      %755 = vmatpush1.msra.mxu0 0.0
      %756 = vmatprep.mubr.f32.mxu0 0.0
      %757 = vmatmul.mubr.f32.gmra.mrb[0].mxu0 %v620
      %v758 = vpop.f32.mrb[0].mxu0
      %v759 = vadd.f32 0.0, %v758
      %v760 = vpop.f32.mrb[0].mxu0
      %761 = vdwg.mxu0
      %762 = vmatprep.subr.mxu0 %v355
      %763 = vmatpush1.msra.mxu0 %v354
      %764 = vmatprep.subr.mxu0 %v360
      %765 = vmatpush1.msra.mxu0 %v359
      %766 = vmatprep.subr.mxu0 %v365
      %767 = vmatpush1.msra.mxu0 %v364
      %768 = vmatprep.subr.mxu0 %v370
      %769 = vmatpush1.msra.mxu0 %v369
      %770 = vmatprep.subr.mxu0 %v375
      %771 = vmatpush1.msra.mxu0 %v374
      %772 = vmatprep.subr.mxu0 %v380
      %773 = vmatpush1.msra.mxu0 %v379
      %774 = vmatprep.subr.mxu0 %v385
      %775 = vmatpush1.msra.mxu0 %v384
      %776 = vmatprep.subr.mxu0 %v390
      %777 = vmatpush1.msra.mxu0 %v389
      %778 = vmatprep.subr.mxu0 %v395
      %779 = vmatpush1.msra.mxu0 %v394
      %780 = vmatprep.subr.mxu0 %v400
      %781 = vmatpush1.msra.mxu0 %v399
      %782 = vmatprep.subr.mxu0 %v405
      %783 = vmatpush1.msra.mxu0 %v404
      %784 = vmatprep.subr.mxu0 %v410
      %785 = vmatpush1.msra.mxu0 %v409
      %786 = vmatprep.subr.mxu0 %v415
      %787 = vmatpush1.msra.mxu0 %v414
      %788 = vmatprep.subr.mxu0 %v420
      %789 = vmatpush1.msra.mxu0 %v419
      %790 = vmatprep.subr.mxu0 %v425
      %791 = vmatpush1.msra.mxu0 %v424
      %792 = vmatprep.subr.mxu0 %v430
      %793 = vmatpush1.msra.mxu0 %v429
      %794 = vmatprep.subr.mxu0 0.0
      %795 = vmatpush1.msra.mxu0 0.0
      %796 = vmatprep.subr.mxu0 0.0
      %797 = vmatpush1.msra.mxu0 0.0
      %798 = vmatprep.subr.mxu0 0.0
      %799 = vmatpush1.msra.mxu0 0.0
      %800 = vmatprep.subr.mxu0 0.0
      %801 = vmatpush1.msra.mxu0 0.0
      %802 = vmatprep.subr.mxu0 0.0
      %803 = vmatpush1.msra.mxu0 0.0
      %804 = vmatprep.subr.mxu0 0.0
      %805 = vmatpush1.msra.mxu0 0.0
      %806 = vmatprep.subr.mxu0 0.0
      %807 = vmatpush1.msra.mxu0 0.0
      %808 = vmatprep.subr.mxu0 0.0
      %809 = vmatpush1.msra.mxu0 0.0
      %810 = vmatprep.subr.mxu0 0.0
      %811 = vmatpush1.msra.mxu0 0.0
      %812 = vmatprep.subr.mxu0 0.0
      %813 = vmatpush1.msra.mxu0 0.0
      %814 = vmatprep.subr.mxu0 0.0
      %815 = vmatpush1.msra.mxu0 0.0
      %816 = vmatprep.subr.mxu0 0.0
      %817 = vmatpush1.msra.mxu0 0.0
      %818 = vmatprep.subr.mxu0 0.0
      %819 = vmatpush1.msra.mxu0 0.0
      %820 = vmatprep.subr.mxu0 0.0
      %821 = vmatpush1.msra.mxu0 0.0
      %822 = vmatprep.subr.mxu0 0.0
      %823 = vmatpush1.msra.mxu0 0.0
      %824 = vmatprep.subr.mxu0 0.0
      %825 = vmatpush1.msra.mxu0 0.0
      %826 = vmatprep.mubr.f32.mxu0 0.0
      %827 = vmatmul.mubr.f32.gmra.mrb[0].mxu0 %v689
      %v828 = vpop.f32.mrb[0].mxu0
      %v829 = vadd.f32 0.0, %v828
      %v830 = vpop.f32.mrb[0].mxu0
      %v831 = vadd.f32 0.0, %v830
      %832 = vdwg.mxu0
      %833 = vmatprep.subr.mxu0 %v357
      %834 = vmatpush1.msra.mxu0 %v356
      %835 = vmatprep.subr.mxu0 %v362
      %836 = vmatpush1.msra.mxu0 %v361
      %837 = vmatprep.subr.mxu0 %v367
      %838 = vmatpush1.msra.mxu0 %v366
      %839 = vmatprep.subr.mxu0 %v372
      %840 = vmatpush1.msra.mxu0 %v371
      %841 = vmatprep.subr.mxu0 %v377
      %842 = vmatpush1.msra.mxu0 %v376
      %843 = vmatprep.subr.mxu0 %v382
      %844 = vmatpush1.msra.mxu0 %v381
      %845 = vmatprep.subr.mxu0 %v387
      %846 = vmatpush1.msra.mxu0 %v386
      %847 = vmatprep.subr.mxu0 %v392
      %848 = vmatpush1.msra.mxu0 %v391
      %849 = vmatprep.subr.mxu0 %v397
      %850 = vmatpush1.msra.mxu0 %v396
      %851 = vmatprep.subr.mxu0 %v402
      %852 = vmatpush1.msra.mxu0 %v401
      %853 = vmatprep.subr.mxu0 %v407
      %854 = vmatpush1.msra.mxu0 %v406
      %855 = vmatprep.subr.mxu0 %v412
      %856 = vmatpush1.msra.mxu0 %v411
      %857 = vmatprep.subr.mxu0 %v417
      %858 = vmatpush1.msra.mxu0 %v416
      %859 = vmatprep.subr.mxu0 %v422
      %860 = vmatpush1.msra.mxu0 %v421
      %861 = vmatprep.subr.mxu0 %v427
      %862 = vmatpush1.msra.mxu0 %v426
      %863 = vmatprep.subr.mxu0 %v432
      %864 = vmatpush1.msra.mxu0 %v431
      %865 = vmatprep.subr.mxu0 0.0
      %866 = vmatpush1.msra.mxu0 0.0
      %867 = vmatprep.subr.mxu0 0.0
      %868 = vmatpush1.msra.mxu0 0.0
      %869 = vmatprep.subr.mxu0 0.0
      %870 = vmatpush1.msra.mxu0 0.0
      %871 = vmatprep.subr.mxu0 0.0
      %872 = vmatpush1.msra.mxu0 0.0
      %873 = vmatprep.subr.mxu0 0.0
      %874 = vmatpush1.msra.mxu0 0.0
      %875 = vmatprep.subr.mxu0 0.0
      %876 = vmatpush1.msra.mxu0 0.0
      %877 = vmatprep.subr.mxu0 0.0
      %878 = vmatpush1.msra.mxu0 0.0
      %879 = vmatprep.subr.mxu0 0.0
      %880 = vmatpush1.msra.mxu0 0.0
      %881 = vmatprep.subr.mxu0 0.0
      %882 = vmatpush1.msra.mxu0 0.0
      %883 = vmatprep.subr.mxu0 0.0
      %884 = vmatpush1.msra.mxu0 0.0
      %885 = vmatprep.subr.mxu0 0.0
      %886 = vmatpush1.msra.mxu0 0.0
      %887 = vmatprep.subr.mxu0 0.0
      %888 = vmatpush1.msra.mxu0 0.0
      %889 = vmatprep.subr.mxu0 0.0
      %890 = vmatpush1.msra.mxu0 0.0
      %891 = vmatprep.subr.mxu0 0.0
      %892 = vmatpush1.msra.mxu0 0.0
      %893 = vmatprep.subr.mxu0 0.0
      %894 = vmatpush1.msra.mxu0 0.0
      %895 = vmatprep.subr.mxu0 0.0
      %896 = vmatpush1.msra.mxu0 0.0
      %897 = vmatprep.mubr.f32.mxu0 0.0
      %898 = vmatmul.mubr.f32.gmra.mrb[0].mxu0 %v689
      %v899 = vpop.f32.mrb[0].mxu0
      %v900 = vadd.f32 0.0, %v899
      %v901 = vpop.f32.mrb[0].mxu0
      %v902 = vadd.f32 0.0, %v901
      %903 = vdwg.mxu0
      %904 = vmatprep.subr.mxu0 0.0
      %905 = vmatpush1.msra.mxu0 %v358
      %906 = vmatprep.subr.mxu0 0.0
      %907 = vmatpush1.msra.mxu0 %v363
      %908 = vmatprep.subr.mxu0 0.0
      %909 = vmatpush1.msra.mxu0 %v368
      %910 = vmatprep.subr.mxu0 0.0
      %911 = vmatpush1.msra.mxu0 %v373
      %912 = vmatprep.subr.mxu0 0.0
      %913 = vmatpush1.msra.mxu0 %v378
      %914 = vmatprep.subr.mxu0 0.0
      %915 = vmatpush1.msra.mxu0 %v383
      %916 = vmatprep.subr.mxu0 0.0
      %917 = vmatpush1.msra.mxu0 %v388
      %918 = vmatprep.subr.mxu0 0.0
      %919 = vmatpush1.msra.mxu0 %v393
      %920 = vmatprep.subr.mxu0 0.0
      %921 = vmatpush1.msra.mxu0 %v398
      %922 = vmatprep.subr.mxu0 0.0
      %923 = vmatpush1.msra.mxu0 %v403
      %924 = vmatprep.subr.mxu0 0.0
      %925 = vmatpush1.msra.mxu0 %v408
      %926 = vmatprep.subr.mxu0 0.0
      %927 = vmatpush1.msra.mxu0 %v413
      %928 = vmatprep.subr.mxu0 0.0
      %929 = vmatpush1.msra.mxu0 %v418
      %930 = vmatprep.subr.mxu0 0.0
      %931 = vmatpush1.msra.mxu0 %v423
      %932 = vmatprep.subr.mxu0 0.0
      %933 = vmatpush1.msra.mxu0 %v428
      %934 = vmatprep.subr.mxu0 0.0
      %935 = vmatpush1.msra.mxu0 %v433
      %936 = vmatprep.subr.mxu0 0.0
      %937 = vmatpush1.msra.mxu0 0.0
      %938 = vmatprep.subr.mxu0 0.0
      %939 = vmatpush1.msra.mxu0 0.0
      %940 = vmatprep.subr.mxu0 0.0
      %941 = vmatpush1.msra.mxu0 0.0
      %942 = vmatprep.subr.mxu0 0.0
      %943 = vmatpush1.msra.mxu0 0.0
      %944 = vmatprep.subr.mxu0 0.0
      %945 = vmatpush1.msra.mxu0 0.0
      %946 = vmatprep.subr.mxu0 0.0
      %947 = vmatpush1.msra.mxu0 0.0
      %948 = vmatprep.subr.mxu0 0.0
      %949 = vmatpush1.msra.mxu0 0.0
      %950 = vmatprep.subr.mxu0 0.0
      %951 = vmatpush1.msra.mxu0 0.0
      %952 = vmatprep.subr.mxu0 0.0
      %953 = vmatpush1.msra.mxu0 0.0
      %954 = vmatprep.subr.mxu0 0.0
      %955 = vmatpush1.msra.mxu0 0.0
      %956 = vmatprep.subr.mxu0 0.0
      %957 = vmatpush1.msra.mxu0 0.0
      %958 = vmatprep.subr.mxu0 0.0
      %959 = vmatpush1.msra.mxu0 0.0
      %960 = vmatprep.subr.mxu0 0.0
      %961 = vmatpush1.msra.mxu0 0.0
      %962 = vmatprep.subr.mxu0 0.0
      %963 = vmatpush1.msra.mxu0 0.0
      %964 = vmatprep.subr.mxu0 0.0
      %965 = vmatpush1.msra.mxu0 0.0
      %966 = vmatprep.subr.mxu0 0.0
      %967 = vmatpush1.msra.mxu0 0.0
      %968 = vmatprep.mubr.f32.mxu0 0.0
      %969 = vmatmul.mubr.f32.gmra.mrb[0].mxu0 %v689
      %v970 = vpop.f32.mrb[0].mxu0
      %v971 = vadd.f32 0.0, %v970
      %v972 = vpop.f32.mrb[0].mxu0
      %973 = vdwg.mxu0
      %974 = vmatprep.subr.mxu0 %v275
      %975 = vmatpush1.msra.mxu0 %v274
      %976 = vmatprep.subr.mxu0 %v280
      %977 = vmatpush1.msra.mxu0 %v279
      %978 = vmatprep.subr.mxu0 %v285
      %979 = vmatpush1.msra.mxu0 %v284
      %980 = vmatprep.subr.mxu0 %v290
      %981 = vmatpush1.msra.mxu0 %v289
      %982 = vmatprep.subr.mxu0 %v295
      %983 = vmatpush1.msra.mxu0 %v294
      %984 = vmatprep.subr.mxu0 %v300
      %985 = vmatpush1.msra.mxu0 %v299
      %986 = vmatprep.subr.mxu0 %v305
      %987 = vmatpush1.msra.mxu0 %v304
      %988 = vmatprep.subr.mxu0 %v310
      %989 = vmatpush1.msra.mxu0 %v309
      %990 = vmatprep.subr.mxu0 %v315
      %991 = vmatpush1.msra.mxu0 %v314
      %992 = vmatprep.subr.mxu0 %v320
      %993 = vmatpush1.msra.mxu0 %v319
      %994 = vmatprep.subr.mxu0 %v325
      %995 = vmatpush1.msra.mxu0 %v324
      %996 = vmatprep.subr.mxu0 %v330
      %997 = vmatpush1.msra.mxu0 %v329
      %998 = vmatprep.subr.mxu0 %v335
      %999 = vmatpush1.msra.mxu0 %v334
      %1000 = vmatprep.subr.mxu0 %v340
      %1001 = vmatpush1.msra.mxu0 %v339
      %1002 = vmatprep.subr.mxu0 %v345
      %1003 = vmatpush1.msra.mxu0 %v344
      %1004 = vmatprep.subr.mxu0 %v350
      %1005 = vmatpush1.msra.mxu0 %v349
      %1006 = vmatprep.subr.mxu0 0.0
      %1007 = vmatpush1.msra.mxu0 0.0
      %1008 = vmatprep.subr.mxu0 0.0
      %1009 = vmatpush1.msra.mxu0 0.0
      %1010 = vmatprep.subr.mxu0 0.0
      %1011 = vmatpush1.msra.mxu0 0.0
      %1012 = vmatprep.subr.mxu0 0.0
      %1013 = vmatpush1.msra.mxu0 0.0
      %1014 = vmatprep.subr.mxu0 0.0
      %1015 = vmatpush1.msra.mxu0 0.0
      %1016 = vmatprep.subr.mxu0 0.0
      %1017 = vmatpush1.msra.mxu0 0.0
      %1018 = vmatprep.subr.mxu0 0.0
      %1019 = vmatpush1.msra.mxu0 0.0
      %1020 = vmatprep.subr.mxu0 0.0
      %1021 = vmatpush1.msra.mxu0 0.0
      %1022 = vmatprep.subr.mxu0 0.0
      %1023 = vmatpush1.msra.mxu0 0.0
      %1024 = vmatprep.subr.mxu0 0.0
      %1025 = vmatpush1.msra.mxu0 0.0
      %1026 = vmatprep.subr.mxu0 0.0
      %1027 = vmatpush1.msra.mxu0 0.0
      %1028 = vmatprep.subr.mxu0 0.0
      %1029 = vmatpush1.msra.mxu0 0.0
      %1030 = vmatprep.subr.mxu0 0.0
      %1031 = vmatpush1.msra.mxu0 0.0
      %1032 = vmatprep.subr.mxu0 0.0
      %1033 = vmatpush1.msra.mxu0 0.0
      %1034 = vmatprep.subr.mxu0 0.0
      %1035 = vmatpush1.msra.mxu0 0.0
      %1036 = vmatprep.subr.mxu0 0.0
      %1037 = vmatpush1.msra.mxu0 0.0
      %1038 = vmatprep.mubr.f32.mxu0 0.0
      %1039 = vmatmul.mubr.f32.gmra.mrb[0].mxu0 %v546
      %v1040 = vpop.f32.mrb[0].mxu0
      %v1041 = vadd.f32 %v829, %v1040
      %v1042 = vpop.f32.mrb[0].mxu0
      %v1043 = vadd.f32 %v831, %v1042
      %1044 = vdwg.mxu0
      %1045 = vmatprep.subr.mxu0 %v277
      %1046 = vmatpush1.msra.mxu0 %v276
      %1047 = vmatprep.subr.mxu0 %v282
      %1048 = vmatpush1.msra.mxu0 %v281
      %1049 = vmatprep.subr.mxu0 %v287
      %1050 = vmatpush1.msra.mxu0 %v286
      %1051 = vmatprep.subr.mxu0 %v292
      %1052 = vmatpush1.msra.mxu0 %v291
      %1053 = vmatprep.subr.mxu0 %v297
      %1054 = vmatpush1.msra.mxu0 %v296
      %1055 = vmatprep.subr.mxu0 %v302
      %1056 = vmatpush1.msra.mxu0 %v301
      %1057 = vmatprep.subr.mxu0 %v307
      %1058 = vmatpush1.msra.mxu0 %v306
      %1059 = vmatprep.subr.mxu0 %v312
      %1060 = vmatpush1.msra.mxu0 %v311
      %1061 = vmatprep.subr.mxu0 %v317
      %1062 = vmatpush1.msra.mxu0 %v316
      %1063 = vmatprep.subr.mxu0 %v322
      %1064 = vmatpush1.msra.mxu0 %v321
      %1065 = vmatprep.subr.mxu0 %v327
      %1066 = vmatpush1.msra.mxu0 %v326
      %1067 = vmatprep.subr.mxu0 %v332
      %1068 = vmatpush1.msra.mxu0 %v331
      %1069 = vmatprep.subr.mxu0 %v337
      %1070 = vmatpush1.msra.mxu0 %v336
      %1071 = vmatprep.subr.mxu0 %v342
      %1072 = vmatpush1.msra.mxu0 %v341
      %1073 = vmatprep.subr.mxu0 %v347
      %1074 = vmatpush1.msra.mxu0 %v346
      %1075 = vmatprep.subr.mxu0 %v352
      %1076 = vmatpush1.msra.mxu0 %v351
      %1077 = vmatprep.subr.mxu0 0.0
      %1078 = vmatpush1.msra.mxu0 0.0
      %1079 = vmatprep.subr.mxu0 0.0
      %1080 = vmatpush1.msra.mxu0 0.0
      %1081 = vmatprep.subr.mxu0 0.0
      %1082 = vmatpush1.msra.mxu0 0.0
      %1083 = vmatprep.subr.mxu0 0.0
      %1084 = vmatpush1.msra.mxu0 0.0
      %1085 = vmatprep.subr.mxu0 0.0
      %1086 = vmatpush1.msra.mxu0 0.0
      %1087 = vmatprep.subr.mxu0 0.0
      %1088 = vmatpush1.msra.mxu0 0.0
      %1089 = vmatprep.subr.mxu0 0.0
      %1090 = vmatpush1.msra.mxu0 0.0
      %1091 = vmatprep.subr.mxu0 0.0
      %1092 = vmatpush1.msra.mxu0 0.0
      %1093 = vmatprep.subr.mxu0 0.0
      %1094 = vmatpush1.msra.mxu0 0.0
      %1095 = vmatprep.subr.mxu0 0.0
      %1096 = vmatpush1.msra.mxu0 0.0
      %1097 = vmatprep.subr.mxu0 0.0
      %1098 = vmatpush1.msra.mxu0 0.0
      %1099 = vmatprep.subr.mxu0 0.0
      %1100 = vmatpush1.msra.mxu0 0.0
      %1101 = vmatprep.subr.mxu0 0.0
      %1102 = vmatpush1.msra.mxu0 0.0
      %1103 = vmatprep.subr.mxu0 0.0
      %1104 = vmatpush1.msra.mxu0 0.0
      %1105 = vmatprep.subr.mxu0 0.0
      %1106 = vmatpush1.msra.mxu0 0.0
      %1107 = vmatprep.subr.mxu0 0.0
      %1108 = vmatpush1.msra.mxu0 0.0
      %1109 = vmatprep.mubr.f32.mxu0 0.0
      %1110 = vmatmul.mubr.f32.gmra.mrb[0].mxu0 %v546
      %v1111 = vpop.f32.mrb[0].mxu0
      %v1112 = vadd.f32 %v900, %v1111
      %v1113 = vpop.f32.mrb[0].mxu0
      %v1114 = vadd.f32 %v902, %v1113
      %1115 = vdwg.mxu0
      %1116 = vmatprep.subr.mxu0 0.0
      %1117 = vmatpush1.msra.mxu0 %v278
      %1118 = vmatprep.subr.mxu0 0.0
      %1119 = vmatpush1.msra.mxu0 %v283
      %1120 = vmatprep.subr.mxu0 0.0
      %1121 = vmatpush1.msra.mxu0 %v288
      %1122 = vmatprep.subr.mxu0 0.0
      %1123 = vmatpush1.msra.mxu0 %v293
      %1124 = vmatprep.subr.mxu0 0.0
      %1125 = vmatpush1.msra.mxu0 %v298
      %1126 = vmatprep.subr.mxu0 0.0
      %1127 = vmatpush1.msra.mxu0 %v303
      %1128 = vmatprep.subr.mxu0 0.0
      %1129 = vmatpush1.msra.mxu0 %v308
      %1130 = vmatprep.subr.mxu0 0.0
      %1131 = vmatpush1.msra.mxu0 %v313
      %1132 = vmatprep.subr.mxu0 0.0
      %1133 = vmatpush1.msra.mxu0 %v318
      %1134 = vmatprep.subr.mxu0 0.0
      %1135 = vmatpush1.msra.mxu0 %v323
      %1136 = vmatprep.subr.mxu0 0.0
      %1137 = vmatpush1.msra.mxu0 %v328
      %1138 = vmatprep.subr.mxu0 0.0
      %1139 = vmatpush1.msra.mxu0 %v333
      %1140 = vmatprep.subr.mxu0 0.0
      %1141 = vmatpush1.msra.mxu0 %v338
      %1142 = vmatprep.subr.mxu0 0.0
      %1143 = vmatpush1.msra.mxu0 %v343
      %1144 = vmatprep.subr.mxu0 0.0
      %1145 = vmatpush1.msra.mxu0 %v348
      %1146 = vmatprep.subr.mxu0 0.0
      %1147 = vmatpush1.msra.mxu0 %v353
      %1148 = vmatprep.subr.mxu0 0.0
      %1149 = vmatpush1.msra.mxu0 0.0
      %1150 = vmatprep.subr.mxu0 0.0
      %1151 = vmatpush1.msra.mxu0 0.0
      %1152 = vmatprep.subr.mxu0 0.0
      %1153 = vmatpush1.msra.mxu0 0.0
      %1154 = vmatprep.subr.mxu0 0.0
      %1155 = vmatpush1.msra.mxu0 0.0
      %1156 = vmatprep.subr.mxu0 0.0
      %1157 = vmatpush1.msra.mxu0 0.0
      %1158 = vmatprep.subr.mxu0 0.0
      %1159 = vmatpush1.msra.mxu0 0.0
      %1160 = vmatprep.subr.mxu0 0.0
      %1161 = vmatpush1.msra.mxu0 0.0
      %1162 = vmatprep.subr.mxu0 0.0
      %1163 = vmatpush1.msra.mxu0 0.0
      %1164 = vmatprep.subr.mxu0 0.0
      %1165 = vmatpush1.msra.mxu0 0.0
      %1166 = vmatprep.subr.mxu0 0.0
      %1167 = vmatpush1.msra.mxu0 0.0
      %1168 = vmatprep.subr.mxu0 0.0
      %1169 = vmatpush1.msra.mxu0 0.0
      %1170 = vmatprep.subr.mxu0 0.0
      %1171 = vmatpush1.msra.mxu0 0.0
      %1172 = vmatprep.subr.mxu0 0.0
      %1173 = vmatpush1.msra.mxu0 0.0
      %1174 = vmatprep.subr.mxu0 0.0
      %1175 = vmatpush1.msra.mxu0 0.0
      %1176 = vmatprep.subr.mxu0 0.0
      %1177 = vmatpush1.msra.mxu0 0.0
      %1178 = vmatprep.subr.mxu0 0.0
      %1179 = vmatpush1.msra.mxu0 0.0
      %1180 = vmatprep.mubr.f32.mxu0 0.0
      %1181 = vmatmul.mubr.f32.gmra.mrb[0].mxu0 %v546
      %v1182 = vpop.f32.mrb[0].mxu0
      %v1183 = vadd.f32 %v971, %v1182
      %v1184 = vpop.f32.mrb[0].mxu0
      %1185 = vdwg.mxu0
      %v1187 = vlaneseq
      %v1188 = vshrl.u32 %v1187, 7
      %v1189 = vsub.s32 0, %v1188
      %v1190 = vrot.slane %v434, %v1189
      %v1191 = vlaneseq
      %v1192 = vshrl.u32 %v1191, 7
      %v1193 = vsub.s32 1, %v1192
      %v1194 = vrot.slane %v434, %v1193
      %v1195 = vlaneseq
      %v1196 = vshrl.u32 %v1195, 7
      %v1197 = vsub.s32 2, %v1196
      %v1198 = vrot.slane %v434, %v1197
      %v1199 = vlaneseq
      %v1200 = vshrl.u32 %v1199, 7
      %v1201 = vsub.s32 3, %v1200
      %v1202 = vrot.slane %v434, %v1201
      %v1203 = vlaneseq
      %v1204 = vshrl.u32 %v1203, 7
      %v1205 = vsub.s32 4, %v1204
      %v1206 = vrot.slane %v434, %v1205
      %v1212 = vadd.f32 %v1041, %v1190
      %v1213 = vadd.f32 %v1043, %v1194
      %v1214 = vadd.f32 %v1112, %v1198
      %v1215 = vadd.f32 %v1114, %v1202
      %v1216 = vadd.f32 %v1183, %v1206
      %v1217 = vxor.u32 %v1212, 2147483648
      %v1218 = vmul.f32 %v1217, 1.442695
      %v1219 = vpow.pop %v1218
      %v1220 = vadd.f32 %v1219, 1.0
      %v1221 = vrcp.pop %v1220
      %v1222 = vmul.f32 1.0, %v1221
      %v1223 = vxor.u32 %v1213, 2147483648
      %v1224 = vmul.f32 %v1223, 1.442695
      %v1225 = vpow.pop %v1224
      %v1226 = vadd.f32 %v1225, 1.0
      %v1227 = vrcp.pop %v1226
      %v1228 = vmul.f32 1.0, %v1227
      %v1229 = vxor.u32 %v1214, 2147483648
      %v1230 = vmul.f32 %v1229, 1.442695
      %v1231 = vpow.pop %v1230
      %v1232 = vadd.f32 %v1231, 1.0
      %v1233 = vrcp.pop %v1232
      %v1234 = vmul.f32 1.0, %v1233
      %v1235 = vtanh.pop %v1215
      %v1236 = vxor.u32 %v1216, 2147483648
      %v1237 = vmul.f32 %v1236, 1.442695
      %v1238 = vpow.pop %v1237
      %v1239 = vadd.f32 %v1238, 1.0
      %v1240 = vrcp.pop %v1239
      %v1241 = vmul.f32 1.0, %v1240
      %v1242 = vmul.f32 %v1222, %v1235
      %v1243 = vmul.f32 %v1228, %v616
      %v1244 = vadd.f32 %v1242, %v1243
      %v1245 = vmul.f32 %v1234, %v759
      %v1246 = vadd.f32 %v1244, %v1245
      %v1247 = vtanh.pop %v1246
      %v1248 = vmul.f32 %v1241, %v1247
      %s1249 = sld [smem:[#allocation10 + %s446]]
      %p1250 = scmp.ne.s32.totalorder %s1249, 15
      // Predicated region
      $region73: #{tpu_custom_call.1} parent=69 // pred_check
        %p1251 = pneg %p1250
      $region74: #{tpu_custom_call.1} parent=69 // pred_check_branch
        %1253 = sbr.rel (%p1251) target = $region76
      $region75: #{tpu_custom_call.1} parent=69 // pred_region
        %s1254 = scalar_lea.vmem [#allocation2], %s1249
        %1255 = vst [vmem:[%s1254] sm:$0x1] %v1248
        %s1256 = scalar_lea.vmem [#allocation3], %s1249
        %1257 = vst [vmem:[%s1256] sm:$0x1] %v1246
      $region76: #{tpu_custom_call.1} parent=69 // pred_fallthru
        _
      %s1258 = sld [smem:[#allocation10 + %s451]]
      %p1259 = scmp.ne.s32.totalorder %s1258, 31
      // Predicated region
      $region77: #{tpu_custom_call.1} parent=69 // pred_check
        %p1260 = pneg %p1259
      $region78: #{tpu_custom_call.1} parent=69 // pred_check_branch
        %1262 = sbr.rel (%p1260) target = $region80
      $region79: #{tpu_custom_call.1} parent=69 // pred_region
        %s1263 = scalar_lea.vmem [#allocation2], %s1258
        %1264 = vst [vmem:[%s1263 - $0x1] sm:$0x2] %v1248
        %s1265 = scalar_lea.vmem [#allocation3], %s1258
        %1266 = vst [vmem:[%s1265 - $0x1] sm:$0x2] %v1246
      $region80: #{tpu_custom_call.1} parent=69 // pred_fallthru
        _
    $region70: #{tpu_custom_call.1} parent=1 // loop_footer
      %s444 = sadd.s32 1, %s440
    $region71: #{tpu_custom_call.1} parent=1 // loop_footer_branch
      %439 = sbr.rel target = $region67
    $region72: #{tpu_custom_call.1} parent=1 // loop_exit
      _
    %s1267 = sld [smem:[#allocation11]]
    %s1268 = scalar_lea.vmem [#allocation2], %s1267
    %v1269 = vld [vmem:[%s1268] sm:$0x1]
    %1270 = vst [vmem:[#allocation16] sm:$0x1] %v1269
    %s1271 = sld [smem:[#allocation11 + $0x1]]
    %s1272 = scalar_lea.vmem [#allocation2], %s1271
    %v1273 = vld [vmem:[%s1272] sm:$0x1]
    %1274 = vst [vmem:[#allocation16 + $0x1] sm:$0x1] %v1273
    // Predicated region
    $region81: #{tpu_custom_call.1} parent=1 // pred_check
      _
    $region82: #{tpu_custom_call.1} parent=1 // pred_check_branch
      %1276 = sbr.rel (0) target = $region84
    $region83: #{tpu_custom_call.1} parent=1 // pred_region
      %s1278 = ssub.s32 32, 32
      %1279 = vsyncadd [#allocation6], %s1278
      %s1281 = sshll.u32 [#allocation16], 4
      %s1282 = int_to_ptr.vmem [resolvable:$true] %s1281
      %1284 = dma.vmem_to_hbm [thread:$0]  %s1282, 32, %s10, [#allocation6]
    $region84: #{tpu_custom_call.1} parent=1 // pred_fallthru
      _
    // Predicated region
    $region85: #{tpu_custom_call.1} parent=1 // pred_check
      _
    $region86: #{tpu_custom_call.1} parent=1 // pred_check_branch
      %1286 = sbr.rel (0) target = $region88
    $region87: #{tpu_custom_call.1} parent=1 // pred_region
      %1287 = dma.done [#allocation6], 32
    $region88: #{tpu_custom_call.1} parent=1 // pred_fallthru
      _
    %1288 = vsyncpa [#allocation5], 1
    %1289 = vsyncpa [#allocation15], 1
    %1290 = vsyncpa [#allocation6], 1
    %1291 = vsyncpa [#allocation7], 1
    %1292 = vsyncpa [#allocation9], 1
    %1293 = vsyncpa [#allocation12], 1

</llo_original>
